<compile_context>
chip_gen: v7x
topology: tpu7x:2x2x1
jax: 0.10.0
libtpu: 0.0.40
codegen_flags: <defaults>
</compile_context>

<pallas_src>
import functools

import jax
import jax.numpy as jnp
import numpy as np
from jax.experimental import pallas as pl
from jax.experimental.pallas import tpu as pltpu


# ------------------------------ small helpers --------------------------------

def _round_up(x, m):
    return ((x + m - 1) // m) * m


def _choose_tile(n):
    """Batch tile: multiple of 8, <=256 rows, >=2 grid steps when batch allows."""
    n8 = _round_up(max(n, 1), 8)
    steps = max(1, -(-n8 // 256))
    if steps == 1 and n8 >= 16:
        steps = 2                      # let v7x's two TensorCores both work
    return _round_up(-(-n8 // steps), 8)


def _im2col_conv1(image):
    """(N,7,7,3) NHWC -> (9, N, 64): per pooled position, the four 2x2x3 conv1
    patches (12 values each, zero-padded to 16) side by side in the lane dim."""
    n = image.shape[0]
    groups = []
    for hp in range(3):
        for wp in range(3):
            taps = []
            for pi in range(2):
                for pj in range(2):
                    oi, oj = 2 * hp + pi, 2 * wp + pj
                    patch = image[:, oi:oi + 2, oj:oj + 2, :].reshape(n, 12)
                    taps.append(jnp.pad(patch, ((0, 0), (0, 4))))
            groups.append(jnp.concatenate(taps, axis=1))       # (N, 64)
    return jnp.stack(groups, axis=0)                           # (9, N, 64)


# ----------------------------- fused Pallas kernel ---------------------------

def _actor_critic_kernel(patch_ref, data_ref,
                         w1_ref, b1_ref, w2_ref, b2_ref, w3_ref, b3_ref,
                         wh1i_ref, wh1d_ref, bh1_ref, wh2_ref, bh2_ref,
                         out_ref, *, num_outputs):
    f32 = jnp.float32
    tb = out_ref.shape[0]                         # batch tile size

    # ---- conv1 (MXU) + ReLU + fused 2x2 maxpool.
    # patch_ref[q] : (tb, 64) = 4 taps x (12 values padded to 16).
    # w1 is a (64,64) block-diagonal of 4 copies of the padded (16,16) conv1
    # weight, so one matmul produces all 4 conv1 outputs of a pool window side
    # by side in lanes; pooling is a max over the four 16-lane groups.
    w1 = w1_ref[...]                              # (64, 64)
    b1 = b1_ref[...]                              # (1, 64)
    pooled = []
    for q in range(9):                            # 3x3 pooled positions
        yq = jnp.maximum(
            jnp.dot(patch_ref[q], w1, preferred_element_type=f32) + b1, 0.0)
        pq = jnp.maximum(jnp.maximum(yq[:, 0:16], yq[:, 16:32]),
                         jnp.maximum(yq[:, 32:48], yq[:, 48:64]))
        pooled.append(pq)                         # (tb, 16)

    # ---- conv2: all 4 output positions in ONE (4*tb, 64) @ (64, 32) matmul.
    taps = ((0, 0), (0, 1), (1, 0), (1, 1))
    x2 = jnp.concatenate(
        [jnp.concatenate([pooled[(i + di) * 3 + (j + dj)] for (di, dj) in taps],
                         axis=1)                               # (tb, 64)
         for (i, j) in taps], axis=0)                          # (4*tb, 64)
    y2 = jnp.maximum(
        jnp.dot(x2, w2_ref[...], preferred_element_type=f32) + b2_ref[...], 0.0)

    # ---- conv3: spatial collapses to 1x1 -> ONE (tb, 128) @ (128, 64) matmul.
    x3 = jnp.concatenate([y2[k * tb:(k + 1) * tb, :] for k in range(4)], axis=1)
    feats = jnp.maximum(
        jnp.dot(x3, w3_ref[...], preferred_element_type=f32) + b3_ref[...], 0.0)

    # ---- fused actor/critic heads.
    # hidden = tanh([feats | data] @ [wa1 | wc1] + [ba1 | bc1])  -> (tb, 128)
    h = jnp.tanh(jnp.dot(feats, wh1i_ref[...], preferred_element_type=f32)
                 + jnp.dot(data_ref[...], wh1d_ref[...], preferred_element_type=f32)
                 + bh1_ref[...])
    # block-diagonal second layer (padded to 128 lanes for an unmasked store):
    # cols [0:A) = actor logits, col A = critic value, cols > A = 0.
    out = jnp.dot(h, wh2_ref[...], preferred_element_type=f32) + bh2_ref[...]

    col = jax.lax.broadcasted_iota(jnp.int32, out.shape, 1)
    is_logit = col < num_outputs
    m = jnp.max(jnp.where(is_logit, out, -jnp.inf), axis=1, keepdims=True)
    s = jnp.sum(jnp.where(is_logit, jnp.exp(out - m), 0.0), axis=1, keepdims=True)
    lse = jnp.log(s) + m
    # subtract lse only on the logit columns -> [log_softmax | value | 0 pad]
    out_ref[...] = out - jnp.where(is_logit, lse, 0.0)


# --------------------------------- wrapper -----------------------------------

def actor_critic_forward(packed, image, data, *, num_outputs, tile=None):
    """image: (N,7,7,3) NHWC f32; data: (N,D) f32 -> (log_probs (N,A), value (N,))."""
    n = image.shape[0]
    d = data.shape[1]
    if tile is None:
        tile = _choose_tile(n)
    n_pad = _round_up(n, tile)
    if n_pad != n:                                 # pad batch to the tile size
        image = jnp.pad(image, ((0, n_pad - n), (0, 0), (0, 0), (0, 0)))
        data = jnp.pad(data, ((0, n_pad - n), (0, 0)))

    patches = _im2col_conv1(image)                 # (9, n_pad, 64), lane-dense

    weight_names = ("w1", "b1", "w2", "b2", "w3", "b3",
                    "wh1i", "wh1d", "bh1", "wh2", "bh2")
    weights = [packed[k] for k in weight_names]

    def full_spec(arr):
        nd = arr.ndim
        return pl.BlockSpec(arr.shape, lambda i, _nd=nd: (0,) * _nd)

    out = pl.pallas_call(
        functools.partial(_actor_critic_kernel, num_outputs=num_outputs),
        out_shape=jax.ShapeDtypeStruct((n_pad, 128), jnp.float32),
        grid=(n_pad // tile,),
        in_specs=[pl.BlockSpec((9, tile, 64), lambda i: (0, i, 0)),
                  pl.BlockSpec((tile, d), lambda i: (i, 0))]
                 + [full_spec(w) for w in weights],
        out_specs=pl.BlockSpec((tile, 128), lambda i: (i, 0)),
        compiler_params=pltpu.CompilerParams(
            dimension_semantics=("parallel",),
            vmem_limit_bytes=32 * 1024 * 1024),
    )(patches, data, *weights)

    # TODO(synk): torch.distributions.Categorical has no Pallas equivalent; we
    # return its normalized log-probabilities (log_softmax output) instead.
    return out[:n, :num_outputs], out[:n, num_outputs]


# ------------------------------ parameters -----------------------------------

def init_actor_critic_params(key, num_inputs, num_outputs):
    ks = jax.random.split(key, 7)

    def conv_w(k, cin, cout):
        # deterministic stand-in for PyTorch's default conv init (fan-in scaled)
        w = jax.random.normal(k, (2, 2, cin, cout), jnp.float32) / jnp.sqrt(4.0 * cin)
        return w.reshape(4 * cin, cout)                  # rows ordered (di, dj, cin)

    def lin_w(k, fin, fout):
        # init_params: N(0,1) then each output unit's weight vector L2-normalized.
        w = jax.random.normal(k, (fin, fout), jnp.float32)
        return w / jnp.sqrt(jnp.sum(w * w, axis=0, keepdims=True))

    return dict(
        w_conv1=conv_w(ks[0], 3, 16),  b_conv1=jnp.zeros((16,), jnp.float32),
        w_conv2=conv_w(ks[1], 16, 32), b_conv2=jnp.zeros((32,), jnp.float32),
        w_conv3=conv_w(ks[2], 32, 64), b_conv3=jnp.zeros((64,), jnp.float32),
        wa1=lin_w(ks[3], num_inputs, 64),   ba1=jnp.zeros((64,), jnp.float32),
        wa2=lin_w(ks[4], 64, num_outputs),  ba2=jnp.zeros((num_outputs,), jnp.float32),
        wc1=lin_w(ks[5], num_inputs, 64),   bc1=jnp.zeros((64,), jnp.float32),
        wc2=lin_w(ks[6], 64, 1),            bc2=jnp.zeros((1,), jnp.float32),
    )


def pack_params(p):
    """Repack reference-layout params into the fused-kernel (2-D, lane-dense) layout."""
    num_outputs = p["wa2"].shape[1]

    # conv1: (12,16) -> zero-pad rows to (16,16) -> 4-copy block diagonal (64,64)
    w1p = jnp.zeros((16, 16), jnp.float32).at[:12, :].set(p["w_conv1"])
    w1 = jnp.zeros((64, 64), jnp.float32)
    for t in range(4):
        w1 = w1.at[t * 16:(t + 1) * 16, t * 16:(t + 1) * 16].set(w1p)
    b1 = jnp.tile(p["b_conv1"], 4).reshape(1, 64)

    # head second layer, padded to 128 output lanes: [wa2 0; 0 wc2; 0 0]
    wh2 = jnp.zeros((128, 128), jnp.float32)
    wh2 = wh2.at[:64, :num_outputs].set(p["wa2"])
    wh2 = wh2.at[64:, num_outputs].set(p["wc2"][:, 0])
    bh2 = jnp.zeros((1, 128), jnp.float32)
    bh2 = bh2.at[0, :num_outputs].set(p["ba2"])
    bh2 = bh2.at[0, num_outputs].set(p["bc2"][0])

    return dict(
        w1=w1, b1=b1,
        w2=p["w_conv2"], b2=p["b_conv2"].reshape(1, -1),       # (64,32), (1,32)
        w3=p["w_conv3"], b3=p["b_conv3"].reshape(1, -1),       # (128,64), (1,64)
        wh1i=jnp.concatenate([p["wa1"][:64], p["wc1"][:64]], axis=1),   # (64, 128)
        wh1d=jnp.concatenate([p["wa1"][64:], p["wc1"][64:]], axis=1),   # (D, 128)
        bh1=jnp.concatenate([p["ba1"], p["bc1"]]).reshape(1, -1),       # (1, 128)
        wh2=wh2, bh2=bh2,                                               # (128,128),(1,128)
    )


# ------------------------------ reference ------------------------------------

def reference_forward(params, image, data):
    def conv(x, w, b):
        n, h, wd, c = x.shape
        cols = jnp.concatenate(
            [x[:, di:h - 1 + di, dj:wd - 1 + dj, :] for di in (0, 1) for dj in (0, 1)],
            axis=-1).reshape(n * (h - 1) * (wd - 1), 4 * c)
        return jnp.maximum(cols @ w + b, 0.0).reshape(n, h - 1, wd - 1, -1)

    y = conv(image, params["w_conv1"], params["b_conv1"])
    n, h, wd, c = y.shape
    y = jnp.max(y.reshape(n, h // 2, 2, wd // 2, 2, c), axis=(2, 4))
    y = conv(y, params["w_conv2"], params["b_conv2"])
    y = conv(y, params["w_conv3"], params["b_conv3"])
    x = jnp.concatenate([y.reshape(n, -1), data], axis=1)
    ha = jnp.tanh(x @ params["wa1"] + params["ba1"])
    logp = jax.nn.log_softmax(ha @ params["wa2"] + params["ba2"], axis=1)
    hc = jnp.tanh(x @ params["wc1"] + params["bc1"])
    value = (hc @ params["wc2"] + params["bc2"])[:, 0]
    return logp, value


# --------------------------------- main ---------------------------------------

if __name__ == "__main__":
    key = jax.random.PRNGKey(0)
    k_img, k_data, k_param = jax.random.split(key, 3)

    num_inputs = 64 * 1 * 1 + 8   # flattened conv features (64) + data dim (8)
    num_outputs = 7

    params = init_actor_critic_params(k_param, num_inputs, num_outputs)
    packed = pack_params(params)

    fwd = jax.jit(actor_critic_forward, static_argnames=("num_outputs", "tile"))

    # small demo batch
    batch = 2
    image = jax.random.normal(k_img, (batch, 7, 7, 3), jnp.float32)  # NHWC
    data = jax.random.normal(k_data, (batch, 8), jnp.float32)
    logp, value = fwd(packed, image, data, num_outputs=num_outputs)
    jax.block_until_ready((logp, value))

    ref_logp, ref_value = reference_forward(params, image, data)
    np.testing.assert_allclose(np.asarray(logp), np.asarray(ref_logp),
                               rtol=5e-4, atol=5e-4)
    np.testing.assert_allclose(np.asarray(value), np.asarray(ref_value),
                               rtol=5e-4, atol=5e-4)

    # second batch size exercising >1 grid step and batch padding
    batch2 = 20
    image2 = jax.random.normal(k_img, (batch2, 7, 7, 3), jnp.float32)
    data2 = jax.random.normal(k_data, (batch2, 8), jnp.float32)
    logp2, value2 = fwd(packed, image2, data2, num_outputs=num_outputs)
    jax.block_until_ready((logp2, value2))

    ref_logp2, ref_value2 = reference_forward(params, image2, data2)
    np.testing.assert_allclose(np.asarray(logp2), np.asarray(ref_logp2),
                               rtol=5e-4, atol=5e-4)
    np.testing.assert_allclose(np.asarray(value2), np.asarray(ref_value2),
                               rtol=5e-4, atol=5e-4)

    print("KERNEL_OK")
</pallas_src>

<mosaic_0001>
module attributes {stable_mosaic.version = 11 : i64} {
  func.func @_actor_critic_kernel(%arg0: i32, %arg1: memref<9x8x64xf32, #tpu.memory_space<vmem>>, %arg2: memref<8x8xf32, #tpu.memory_space<vmem>>, %arg3: memref<64x64xf32, #tpu.memory_space<vmem>>, %arg4: memref<1x64xf32, #tpu.memory_space<vmem>>, %arg5: memref<64x32xf32, #tpu.memory_space<vmem>>, %arg6: memref<1x32xf32, #tpu.memory_space<vmem>>, %arg7: memref<128x64xf32, #tpu.memory_space<vmem>>, %arg8: memref<1x64xf32, #tpu.memory_space<vmem>>, %arg9: memref<64x128xf32, #tpu.memory_space<vmem>>, %arg10: memref<8x128xf32, #tpu.memory_space<vmem>>, %arg11: memref<1x128xf32, #tpu.memory_space<vmem>>, %arg12: memref<128x128xf32, #tpu.memory_space<vmem>>, %arg13: memref<1x128xf32, #tpu.memory_space<vmem>>, %arg14: memref<8x128xf32, #tpu.memory_space<vmem>>) attributes {dimension_semantics = [#tpu.dimension_semantics<parallel>], iteration_bounds = array<i64: 1>, scalar_prefetch = 0 : i64, scratch_operands = 0 : i64, tpu.core_type = #tpu.core_type<tc>, window_params = [{transform_indices = @transform_0, window_bounds = array<i64: 9, 8, 64>}, {transform_indices = @transform_1, window_bounds = array<i64: 8, 8>}, {pipeline_mode = #tpu.pipeline_mode<synchronous>, transform_indices = @transform_2, window_bounds = array<i64: 64, 64>}, {pipeline_mode = #tpu.pipeline_mode<synchronous>, transform_indices = @transform_3, window_bounds = array<i64: 1, 64>}, {pipeline_mode = #tpu.pipeline_mode<synchronous>, transform_indices = @transform_4, window_bounds = array<i64: 64, 32>}, {pipeline_mode = #tpu.pipeline_mode<synchronous>, transform_indices = @transform_5, window_bounds = array<i64: 1, 32>}, {pipeline_mode = #tpu.pipeline_mode<synchronous>, transform_indices = @transform_6, window_bounds = array<i64: 128, 64>}, {pipeline_mode = #tpu.pipeline_mode<synchronous>, transform_indices = @transform_7, window_bounds = array<i64: 1, 64>}, {pipeline_mode = #tpu.pipeline_mode<synchronous>, transform_indices = @transform_8, window_bounds = array<i64: 64, 128>}, {pipeline_mode = #tpu.pipeline_mode<synchronous>, transform_indices = @transform_9, window_bounds = array<i64: 8, 128>}, {pipeline_mode = #tpu.pipeline_mode<synchronous>, transform_indices = @transform_10, window_bounds = array<i64: 1, 128>}, {pipeline_mode = #tpu.pipeline_mode<synchronous>, transform_indices = @transform_11, window_bounds = array<i64: 128, 128>}, {pipeline_mode = #tpu.pipeline_mode<synchronous>, transform_indices = @transform_12, window_bounds = array<i64: 1, 128>}, {transform_indices = @transform_13, window_bounds = array<i64: 8, 128>}]} {
    %c0 = arith.constant 0 : index
    %c0_0 = arith.constant 0 : index
    %0 = vector.load %arg3[%c0, %c0_0] : memref<64x64xf32, #tpu.memory_space<vmem>>, vector<64x64xf32>
    %c0_1 = arith.constant 0 : index
    %c0_2 = arith.constant 0 : index
    %1 = vector.load %arg4[%c0_1, %c0_2] : memref<1x64xf32, #tpu.memory_space<vmem>>, vector<1x64xf32>
    %c0_3 = arith.constant 0 : index
    %c0_4 = arith.constant 0 : index
    %c0_5 = arith.constant 0 : index
    %2 = vector.load %arg1[%c0_3, %c0_4, %c0_5] : memref<9x8x64xf32, #tpu.memory_space<vmem>>, vector<1x8x64xf32>
    %3 = vector.shape_cast %2 : vector<1x8x64xf32> to vector<8x64xf32>
    %cst = arith.constant dense<0.000000e+00> : vector<8x64xf32>
    %4 = tpu.matmul %3, %0, %cst {dimension_numbers = #tpu.dot_dimension_numbers<[1], [0], [0], [1], [0, 0, 1, 1], [], []>} : vector<8x64xf32>, vector<64x64xf32>, vector<8x64xf32> -> vector<8x64xf32>
    %5 = vector.broadcast %1 : vector<1x64xf32> to vector<8x64xf32>
    %6 = arith.addf %4, %5 : vector<8x64xf32>
    %cst_6 = arith.constant 0.000000e+00 : f32
    %7 = vector.broadcast %cst_6 : f32 to vector<8x64xf32>
    %8 = arith.maximumf %6, %7 : vector<8x64xf32>
    %9 = vector.extract_strided_slice %8 {offsets = [0, 0], sizes = [8, 16], strides = [1, 1]} : vector<8x64xf32> to vector<8x16xf32>
    %10 = vector.extract_strided_slice %8 {offsets = [0, 16], sizes = [8, 16], strides = [1, 1]} : vector<8x64xf32> to vector<8x16xf32>
    %11 = arith.maximumf %9, %10 : vector<8x16xf32>
    %12 = vector.extract_strided_slice %8 {offsets = [0, 32], sizes = [8, 16], strides = [1, 1]} : vector<8x64xf32> to vector<8x16xf32>
    %13 = vector.extract_strided_slice %8 {offsets = [0, 48], sizes = [8, 16], strides = [1, 1]} : vector<8x64xf32> to vector<8x16xf32>
    %14 = arith.maximumf %12, %13 : vector<8x16xf32>
    %15 = arith.maximumf %11, %14 : vector<8x16xf32>
    %c1 = arith.constant 1 : index
    %c0_7 = arith.constant 0 : index
    %c0_8 = arith.constant 0 : index
    %16 = vector.load %arg1[%c1, %c0_7, %c0_8] : memref<9x8x64xf32, #tpu.memory_space<vmem>>, vector<1x8x64xf32>
    %17 = vector.shape_cast %16 : vector<1x8x64xf32> to vector<8x64xf32>
    %cst_9 = arith.constant dense<0.000000e+00> : vector<8x64xf32>
    %18 = tpu.matmul %17, %0, %cst_9 {dimension_numbers = #tpu.dot_dimension_numbers<[1], [0], [0], [1], [0, 0, 1, 1], [], []>} : vector<8x64xf32>, vector<64x64xf32>, vector<8x64xf32> -> vector<8x64xf32>
    %19 = vector.broadcast %1 : vector<1x64xf32> to vector<8x64xf32>
    %20 = arith.addf %18, %19 : vector<8x64xf32>
    %cst_10 = arith.constant 0.000000e+00 : f32
    %21 = vector.broadcast %cst_10 : f32 to vector<8x64xf32>
    %22 = arith.maximumf %20, %21 : vector<8x64xf32>
    %23 = vector.extract_strided_slice %22 {offsets = [0, 0], sizes = [8, 16], strides = [1, 1]} : vector<8x64xf32> to vector<8x16xf32>
    %24 = vector.extract_strided_slice %22 {offsets = [0, 16], sizes = [8, 16], strides = [1, 1]} : vector<8x64xf32> to vector<8x16xf32>
    %25 = arith.maximumf %23, %24 : vector<8x16xf32>
    %26 = vector.extract_strided_slice %22 {offsets = [0, 32], sizes = [8, 16], strides = [1, 1]} : vector<8x64xf32> to vector<8x16xf32>
    %27 = vector.extract_strided_slice %22 {offsets = [0, 48], sizes = [8, 16], strides = [1, 1]} : vector<8x64xf32> to vector<8x16xf32>
    %28 = arith.maximumf %26, %27 : vector<8x16xf32>
    %29 = arith.maximumf %25, %28 : vector<8x16xf32>
    %c2 = arith.constant 2 : index
    %c0_11 = arith.constant 0 : index
    %c0_12 = arith.constant 0 : index
    %30 = vector.load %arg1[%c2, %c0_11, %c0_12] : memref<9x8x64xf32, #tpu.memory_space<vmem>>, vector<1x8x64xf32>
    %31 = vector.shape_cast %30 : vector<1x8x64xf32> to vector<8x64xf32>
    %cst_13 = arith.constant dense<0.000000e+00> : vector<8x64xf32>
    %32 = tpu.matmul %31, %0, %cst_13 {dimension_numbers = #tpu.dot_dimension_numbers<[1], [0], [0], [1], [0, 0, 1, 1], [], []>} : vector<8x64xf32>, vector<64x64xf32>, vector<8x64xf32> -> vector<8x64xf32>
    %33 = vector.broadcast %1 : vector<1x64xf32> to vector<8x64xf32>
    %34 = arith.addf %32, %33 : vector<8x64xf32>
    %cst_14 = arith.constant 0.000000e+00 : f32
    %35 = vector.broadcast %cst_14 : f32 to vector<8x64xf32>
    %36 = arith.maximumf %34, %35 : vector<8x64xf32>
    %37 = vector.extract_strided_slice %36 {offsets = [0, 0], sizes = [8, 16], strides = [1, 1]} : vector<8x64xf32> to vector<8x16xf32>
    %38 = vector.extract_strided_slice %36 {offsets = [0, 16], sizes = [8, 16], strides = [1, 1]} : vector<8x64xf32> to vector<8x16xf32>
    %39 = arith.maximumf %37, %38 : vector<8x16xf32>
    %40 = vector.extract_strided_slice %36 {offsets = [0, 32], sizes = [8, 16], strides = [1, 1]} : vector<8x64xf32> to vector<8x16xf32>
    %41 = vector.extract_strided_slice %36 {offsets = [0, 48], sizes = [8, 16], strides = [1, 1]} : vector<8x64xf32> to vector<8x16xf32>
    %42 = arith.maximumf %40, %41 : vector<8x16xf32>
    %43 = arith.maximumf %39, %42 : vector<8x16xf32>
    %c3 = arith.constant 3 : index
    %c0_15 = arith.constant 0 : index
    %c0_16 = arith.constant 0 : index
    %44 = vector.load %arg1[%c3, %c0_15, %c0_16] : memref<9x8x64xf32, #tpu.memory_space<vmem>>, vector<1x8x64xf32>
    %45 = vector.shape_cast %44 : vector<1x8x64xf32> to vector<8x64xf32>
    %cst_17 = arith.constant dense<0.000000e+00> : vector<8x64xf32>
    %46 = tpu.matmul %45, %0, %cst_17 {dimension_numbers = #tpu.dot_dimension_numbers<[1], [0], [0], [1], [0, 0, 1, 1], [], []>} : vector<8x64xf32>, vector<64x64xf32>, vector<8x64xf32> -> vector<8x64xf32>
    %47 = vector.broadcast %1 : vector<1x64xf32> to vector<8x64xf32>
    %48 = arith.addf %46, %47 : vector<8x64xf32>
    %cst_18 = arith.constant 0.000000e+00 : f32
    %49 = vector.broadcast %cst_18 : f32 to vector<8x64xf32>
    %50 = arith.maximumf %48, %49 : vector<8x64xf32>
    %51 = vector.extract_strided_slice %50 {offsets = [0, 0], sizes = [8, 16], strides = [1, 1]} : vector<8x64xf32> to vector<8x16xf32>
    %52 = vector.extract_strided_slice %50 {offsets = [0, 16], sizes = [8, 16], strides = [1, 1]} : vector<8x64xf32> to vector<8x16xf32>
    %53 = arith.maximumf %51, %52 : vector<8x16xf32>
    %54 = vector.extract_strided_slice %50 {offsets = [0, 32], sizes = [8, 16], strides = [1, 1]} : vector<8x64xf32> to vector<8x16xf32>
    %55 = vector.extract_strided_slice %50 {offsets = [0, 48], sizes = [8, 16], strides = [1, 1]} : vector<8x64xf32> to vector<8x16xf32>
    %56 = arith.maximumf %54, %55 : vector<8x16xf32>
    %57 = arith.maximumf %53, %56 : vector<8x16xf32>
    %c4 = arith.constant 4 : index
    %c0_19 = arith.constant 0 : index
    %c0_20 = arith.constant 0 : index
    %58 = vector.load %arg1[%c4, %c0_19, %c0_20] : memref<9x8x64xf32, #tpu.memory_space<vmem>>, vector<1x8x64xf32>
    %59 = vector.shape_cast %58 : vector<1x8x64xf32> to vector<8x64xf32>
    %cst_21 = arith.constant dense<0.000000e+00> : vector<8x64xf32>
    %60 = tpu.matmul %59, %0, %cst_21 {dimension_numbers = #tpu.dot_dimension_numbers<[1], [0], [0], [1], [0, 0, 1, 1], [], []>} : vector<8x64xf32>, vector<64x64xf32>, vector<8x64xf32> -> vector<8x64xf32>
    %61 = vector.broadcast %1 : vector<1x64xf32> to vector<8x64xf32>
    %62 = arith.addf %60, %61 : vector<8x64xf32>
    %cst_22 = arith.constant 0.000000e+00 : f32
    %63 = vector.broadcast %cst_22 : f32 to vector<8x64xf32>
    %64 = arith.maximumf %62, %63 : vector<8x64xf32>
    %65 = vector.extract_strided_slice %64 {offsets = [0, 0], sizes = [8, 16], strides = [1, 1]} : vector<8x64xf32> to vector<8x16xf32>
    %66 = vector.extract_strided_slice %64 {offsets = [0, 16], sizes = [8, 16], strides = [1, 1]} : vector<8x64xf32> to vector<8x16xf32>
    %67 = arith.maximumf %65, %66 : vector<8x16xf32>
    %68 = vector.extract_strided_slice %64 {offsets = [0, 32], sizes = [8, 16], strides = [1, 1]} : vector<8x64xf32> to vector<8x16xf32>
    %69 = vector.extract_strided_slice %64 {offsets = [0, 48], sizes = [8, 16], strides = [1, 1]} : vector<8x64xf32> to vector<8x16xf32>
    %70 = arith.maximumf %68, %69 : vector<8x16xf32>
    %71 = arith.maximumf %67, %70 : vector<8x16xf32>
    %c5 = arith.constant 5 : index
    %c0_23 = arith.constant 0 : index
    %c0_24 = arith.constant 0 : index
    %72 = vector.load %arg1[%c5, %c0_23, %c0_24] : memref<9x8x64xf32, #tpu.memory_space<vmem>>, vector<1x8x64xf32>
    %73 = vector.shape_cast %72 : vector<1x8x64xf32> to vector<8x64xf32>
    %cst_25 = arith.constant dense<0.000000e+00> : vector<8x64xf32>
    %74 = tpu.matmul %73, %0, %cst_25 {dimension_numbers = #tpu.dot_dimension_numbers<[1], [0], [0], [1], [0, 0, 1, 1], [], []>} : vector<8x64xf32>, vector<64x64xf32>, vector<8x64xf32> -> vector<8x64xf32>
    %75 = vector.broadcast %1 : vector<1x64xf32> to vector<8x64xf32>
    %76 = arith.addf %74, %75 : vector<8x64xf32>
    %cst_26 = arith.constant 0.000000e+00 : f32
    %77 = vector.broadcast %cst_26 : f32 to vector<8x64xf32>
    %78 = arith.maximumf %76, %77 : vector<8x64xf32>
    %79 = vector.extract_strided_slice %78 {offsets = [0, 0], sizes = [8, 16], strides = [1, 1]} : vector<8x64xf32> to vector<8x16xf32>
    %80 = vector.extract_strided_slice %78 {offsets = [0, 16], sizes = [8, 16], strides = [1, 1]} : vector<8x64xf32> to vector<8x16xf32>
    %81 = arith.maximumf %79, %80 : vector<8x16xf32>
    %82 = vector.extract_strided_slice %78 {offsets = [0, 32], sizes = [8, 16], strides = [1, 1]} : vector<8x64xf32> to vector<8x16xf32>
    %83 = vector.extract_strided_slice %78 {offsets = [0, 48], sizes = [8, 16], strides = [1, 1]} : vector<8x64xf32> to vector<8x16xf32>
    %84 = arith.maximumf %82, %83 : vector<8x16xf32>
    %85 = arith.maximumf %81, %84 : vector<8x16xf32>
    %c6 = arith.constant 6 : index
    %c0_27 = arith.constant 0 : index
    %c0_28 = arith.constant 0 : index
    %86 = vector.load %arg1[%c6, %c0_27, %c0_28] : memref<9x8x64xf32, #tpu.memory_space<vmem>>, vector<1x8x64xf32>
    %87 = vector.shape_cast %86 : vector<1x8x64xf32> to vector<8x64xf32>
    %cst_29 = arith.constant dense<0.000000e+00> : vector<8x64xf32>
    %88 = tpu.matmul %87, %0, %cst_29 {dimension_numbers = #tpu.dot_dimension_numbers<[1], [0], [0], [1], [0, 0, 1, 1], [], []>} : vector<8x64xf32>, vector<64x64xf32>, vector<8x64xf32> -> vector<8x64xf32>
    %89 = vector.broadcast %1 : vector<1x64xf32> to vector<8x64xf32>
    %90 = arith.addf %88, %89 : vector<8x64xf32>
    %cst_30 = arith.constant 0.000000e+00 : f32
    %91 = vector.broadcast %cst_30 : f32 to vector<8x64xf32>
    %92 = arith.maximumf %90, %91 : vector<8x64xf32>
    %93 = vector.extract_strided_slice %92 {offsets = [0, 0], sizes = [8, 16], strides = [1, 1]} : vector<8x64xf32> to vector<8x16xf32>
    %94 = vector.extract_strided_slice %92 {offsets = [0, 16], sizes = [8, 16], strides = [1, 1]} : vector<8x64xf32> to vector<8x16xf32>
    %95 = arith.maximumf %93, %94 : vector<8x16xf32>
    %96 = vector.extract_strided_slice %92 {offsets = [0, 32], sizes = [8, 16], strides = [1, 1]} : vector<8x64xf32> to vector<8x16xf32>
    %97 = vector.extract_strided_slice %92 {offsets = [0, 48], sizes = [8, 16], strides = [1, 1]} : vector<8x64xf32> to vector<8x16xf32>
    %98 = arith.maximumf %96, %97 : vector<8x16xf32>
    %99 = arith.maximumf %95, %98 : vector<8x16xf32>
    %c7 = arith.constant 7 : index
    %c0_31 = arith.constant 0 : index
    %c0_32 = arith.constant 0 : index
    %100 = vector.load %arg1[%c7, %c0_31, %c0_32] : memref<9x8x64xf32, #tpu.memory_space<vmem>>, vector<1x8x64xf32>
    %101 = vector.shape_cast %100 : vector<1x8x64xf32> to vector<8x64xf32>
    %cst_33 = arith.constant dense<0.000000e+00> : vector<8x64xf32>
    %102 = tpu.matmul %101, %0, %cst_33 {dimension_numbers = #tpu.dot_dimension_numbers<[1], [0], [0], [1], [0, 0, 1, 1], [], []>} : vector<8x64xf32>, vector<64x64xf32>, vector<8x64xf32> -> vector<8x64xf32>
    %103 = vector.broadcast %1 : vector<1x64xf32> to vector<8x64xf32>
    %104 = arith.addf %102, %103 : vector<8x64xf32>
    %cst_34 = arith.constant 0.000000e+00 : f32
    %105 = vector.broadcast %cst_34 : f32 to vector<8x64xf32>
    %106 = arith.maximumf %104, %105 : vector<8x64xf32>
    %107 = vector.extract_strided_slice %106 {offsets = [0, 0], sizes = [8, 16], strides = [1, 1]} : vector<8x64xf32> to vector<8x16xf32>
    %108 = vector.extract_strided_slice %106 {offsets = [0, 16], sizes = [8, 16], strides = [1, 1]} : vector<8x64xf32> to vector<8x16xf32>
    %109 = arith.maximumf %107, %108 : vector<8x16xf32>
    %110 = vector.extract_strided_slice %106 {offsets = [0, 32], sizes = [8, 16], strides = [1, 1]} : vector<8x64xf32> to vector<8x16xf32>
    %111 = vector.extract_strided_slice %106 {offsets = [0, 48], sizes = [8, 16], strides = [1, 1]} : vector<8x64xf32> to vector<8x16xf32>
    %112 = arith.maximumf %110, %111 : vector<8x16xf32>
    %113 = arith.maximumf %109, %112 : vector<8x16xf32>
    %c8 = arith.constant 8 : index
    %c0_35 = arith.constant 0 : index
    %c0_36 = arith.constant 0 : index
    %114 = vector.load %arg1[%c8, %c0_35, %c0_36] : memref<9x8x64xf32, #tpu.memory_space<vmem>>, vector<1x8x64xf32>
    %115 = vector.shape_cast %114 : vector<1x8x64xf32> to vector<8x64xf32>
    %cst_37 = arith.constant dense<0.000000e+00> : vector<8x64xf32>
    %116 = tpu.matmul %115, %0, %cst_37 {dimension_numbers = #tpu.dot_dimension_numbers<[1], [0], [0], [1], [0, 0, 1, 1], [], []>} : vector<8x64xf32>, vector<64x64xf32>, vector<8x64xf32> -> vector<8x64xf32>
    %117 = vector.broadcast %1 : vector<1x64xf32> to vector<8x64xf32>
    %118 = arith.addf %116, %117 : vector<8x64xf32>
    %cst_38 = arith.constant 0.000000e+00 : f32
    %119 = vector.broadcast %cst_38 : f32 to vector<8x64xf32>
    %120 = arith.maximumf %118, %119 : vector<8x64xf32>
    %121 = vector.extract_strided_slice %120 {offsets = [0, 0], sizes = [8, 16], strides = [1, 1]} : vector<8x64xf32> to vector<8x16xf32>
    %122 = vector.extract_strided_slice %120 {offsets = [0, 16], sizes = [8, 16], strides = [1, 1]} : vector<8x64xf32> to vector<8x16xf32>
    %123 = arith.maximumf %121, %122 : vector<8x16xf32>
    %124 = vector.extract_strided_slice %120 {offsets = [0, 32], sizes = [8, 16], strides = [1, 1]} : vector<8x64xf32> to vector<8x16xf32>
    %125 = vector.extract_strided_slice %120 {offsets = [0, 48], sizes = [8, 16], strides = [1, 1]} : vector<8x64xf32> to vector<8x16xf32>
    %126 = arith.maximumf %124, %125 : vector<8x16xf32>
    %127 = arith.maximumf %123, %126 : vector<8x16xf32>
    %128 = tpu.concatenate %15, %29, %57, %71 in 1 : vector<8x16xf32>, vector<8x16xf32>, vector<8x16xf32>, vector<8x16xf32> -> vector<8x64xf32>
    %129 = tpu.concatenate %29, %43, %71, %85 in 1 : vector<8x16xf32>, vector<8x16xf32>, vector<8x16xf32>, vector<8x16xf32> -> vector<8x64xf32>
    %130 = tpu.concatenate %57, %71, %99, %113 in 1 : vector<8x16xf32>, vector<8x16xf32>, vector<8x16xf32>, vector<8x16xf32> -> vector<8x64xf32>
    %131 = tpu.concatenate %71, %85, %113, %127 in 1 : vector<8x16xf32>, vector<8x16xf32>, vector<8x16xf32>, vector<8x16xf32> -> vector<8x64xf32>
    %132 = tpu.concatenate %128, %129, %130, %131 in 0 : vector<8x64xf32>, vector<8x64xf32>, vector<8x64xf32>, vector<8x64xf32> -> vector<32x64xf32>
    %c0_39 = arith.constant 0 : index
    %c0_40 = arith.constant 0 : index
    %133 = vector.load %arg5[%c0_39, %c0_40] : memref<64x32xf32, #tpu.memory_space<vmem>>, vector<64x32xf32>
    %cst_41 = arith.constant dense<0.000000e+00> : vector<32x32xf32>
    %134 = tpu.matmul %132, %133, %cst_41 {dimension_numbers = #tpu.dot_dimension_numbers<[1], [0], [0], [1], [0, 0, 1, 1], [], []>} : vector<32x64xf32>, vector<64x32xf32>, vector<32x32xf32> -> vector<32x32xf32>
    %c0_42 = arith.constant 0 : index
    %c0_43 = arith.constant 0 : index
    %135 = vector.load %arg6[%c0_42, %c0_43] : memref<1x32xf32, #tpu.memory_space<vmem>>, vector<1x32xf32>
    %136 = vector.broadcast %135 : vector<1x32xf32> to vector<32x32xf32>
    %137 = arith.addf %134, %136 : vector<32x32xf32>
    %cst_44 = arith.constant 0.000000e+00 : f32
    %138 = vector.broadcast %cst_44 : f32 to vector<32x32xf32>
    %139 = arith.maximumf %137, %138 : vector<32x32xf32>
    %140 = vector.extract_strided_slice %139 {offsets = [0, 0], sizes = [8, 32], strides = [1, 1]} : vector<32x32xf32> to vector<8x32xf32>
    %141 = vector.extract_strided_slice %139 {offsets = [8, 0], sizes = [8, 32], strides = [1, 1]} : vector<32x32xf32> to vector<8x32xf32>
    %142 = vector.extract_strided_slice %139 {offsets = [16, 0], sizes = [8, 32], strides = [1, 1]} : vector<32x32xf32> to vector<8x32xf32>
    %143 = vector.extract_strided_slice %139 {offsets = [24, 0], sizes = [8, 32], strides = [1, 1]} : vector<32x32xf32> to vector<8x32xf32>
    %144 = tpu.concatenate %140, %141, %142, %143 in 1 : vector<8x32xf32>, vector<8x32xf32>, vector<8x32xf32>, vector<8x32xf32> -> vector<8x128xf32>
    %c0_45 = arith.constant 0 : index
    %c0_46 = arith.constant 0 : index
    %145 = vector.load %arg7[%c0_45, %c0_46] : memref<128x64xf32, #tpu.memory_space<vmem>>, vector<128x64xf32>
    %cst_47 = arith.constant dense<0.000000e+00> : vector<8x64xf32>
    %146 = tpu.matmul %144, %145, %cst_47 {dimension_numbers = #tpu.dot_dimension_numbers<[1], [0], [0], [1], [0, 0, 1, 1], [], []>} : vector<8x128xf32>, vector<128x64xf32>, vector<8x64xf32> -> vector<8x64xf32>
    %c0_48 = arith.constant 0 : index
    %c0_49 = arith.constant 0 : index
    %147 = vector.load %arg8[%c0_48, %c0_49] : memref<1x64xf32, #tpu.memory_space<vmem>>, vector<1x64xf32>
    %148 = vector.broadcast %147 : vector<1x64xf32> to vector<8x64xf32>
    %149 = arith.addf %146, %148 : vector<8x64xf32>
    %cst_50 = arith.constant 0.000000e+00 : f32
    %150 = vector.broadcast %cst_50 : f32 to vector<8x64xf32>
    %151 = arith.maximumf %149, %150 : vector<8x64xf32>
    %c0_51 = arith.constant 0 : index
    %c0_52 = arith.constant 0 : index
    %152 = vector.load %arg9[%c0_51, %c0_52] : memref<64x128xf32, #tpu.memory_space<vmem>>, vector<64x128xf32>
    %cst_53 = arith.constant dense<0.000000e+00> : vector<8x128xf32>
    %153 = tpu.matmul %151, %152, %cst_53 {dimension_numbers = #tpu.dot_dimension_numbers<[1], [0], [0], [1], [0, 0, 1, 1], [], []>} : vector<8x64xf32>, vector<64x128xf32>, vector<8x128xf32> -> vector<8x128xf32>
    %c0_54 = arith.constant 0 : index
    %c0_55 = arith.constant 0 : index
    %154 = vector.load %arg2[%c0_54, %c0_55] : memref<8x8xf32, #tpu.memory_space<vmem>>, vector<8x8xf32>
    %c0_56 = arith.constant 0 : index
    %c0_57 = arith.constant 0 : index
    %155 = vector.load %arg10[%c0_56, %c0_57] : memref<8x128xf32, #tpu.memory_space<vmem>>, vector<8x128xf32>
    %cst_58 = arith.constant dense<0.000000e+00> : vector<8x128xf32>
    %156 = tpu.matmul %154, %155, %cst_58 {dimension_numbers = #tpu.dot_dimension_numbers<[1], [0], [0], [1], [0, 0, 1, 1], [], []>} : vector<8x8xf32>, vector<8x128xf32>, vector<8x128xf32> -> vector<8x128xf32>
    %157 = arith.addf %153, %156 : vector<8x128xf32>
    %c0_59 = arith.constant 0 : index
    %c0_60 = arith.constant 0 : index
    %158 = vector.load %arg11[%c0_59, %c0_60] : memref<1x128xf32, #tpu.memory_space<vmem>>, vector<1x128xf32>
    %159 = vector.broadcast %158 : vector<1x128xf32> to vector<8x128xf32>
    %160 = arith.addf %157, %159 : vector<8x128xf32>
    %161 = math.tanh %160 : vector<8x128xf32>
    %c0_61 = arith.constant 0 : index
    %c0_62 = arith.constant 0 : index
    %162 = vector.load %arg12[%c0_61, %c0_62] : memref<128x128xf32, #tpu.memory_space<vmem>>, vector<128x128xf32>
    %cst_63 = arith.constant dense<0.000000e+00> : vector<8x128xf32>
    %163 = tpu.matmul %161, %162, %cst_63 {dimension_numbers = #tpu.dot_dimension_numbers<[1], [0], [0], [1], [0, 0, 1, 1], [], []>} : vector<8x128xf32>, vector<128x128xf32>, vector<8x128xf32> -> vector<8x128xf32>
    %c0_64 = arith.constant 0 : index
    %c0_65 = arith.constant 0 : index
    %164 = vector.load %arg13[%c0_64, %c0_65] : memref<1x128xf32, #tpu.memory_space<vmem>>, vector<1x128xf32>
    %165 = vector.broadcast %164 : vector<1x128xf32> to vector<8x128xf32>
    %166 = arith.addf %163, %165 : vector<8x128xf32>
    %167 = tpu.iota {dimensions = array<i32: 1>} : vector<8x128xi32>
    %c7_i32 = arith.constant 7 : i32
    %168 = vector.broadcast %c7_i32 : i32 to vector<8x128xi32>
    %169 = arith.cmpi slt, %167, %168 : vector<8x128xi32>
    %cst_66 = arith.constant 0xFF800000 : f32
    %170 = vector.broadcast %cst_66 : f32 to vector<8x128xf32>
    %171 = arith.select %169, %166, %170 : vector<8x128xi1>, vector<8x128xf32>
    %cst_67 = arith.constant dense<0xFF800000> : vector<8xf32>
    %172 = vector.multi_reduction <maximumf>, %171, %cst_67 [1] : vector<8x128xf32> to vector<8xf32>
    %173 = vector.shape_cast %172 : vector<8xf32> to vector<8x1xf32>
    %174 = vector.broadcast %173 : vector<8x1xf32> to vector<8x128xf32>
    %175 = arith.subf %166, %174 : vector<8x128xf32>
    %176 = math.exp %175 : vector<8x128xf32>
    %cst_68 = arith.constant 0.000000e+00 : f32
    %177 = vector.broadcast %cst_68 : f32 to vector<8x128xf32>
    %178 = arith.select %169, %176, %177 : vector<8x128xi1>, vector<8x128xf32>
    %cst_69 = arith.constant dense<0.000000e+00> : vector<8xf32>
    %179 = vector.multi_reduction <add>, %178, %cst_69 [1] : vector<8x128xf32> to vector<8xf32>
    %180 = vector.shape_cast %179 : vector<8xf32> to vector<8x1xf32>
    %181 = math.log %180 : vector<8x1xf32>
    %182 = arith.addf %181, %173 : vector<8x1xf32>
    %cst_70 = arith.constant 0.000000e+00 : f32
    %183 = vector.shape_cast %182 : vector<8x1xf32> to vector<8x1xf32>
    %184 = vector.broadcast %183 : vector<8x1xf32> to vector<8x128xf32>
    %185 = vector.broadcast %cst_70 : f32 to vector<8x128xf32>
    %186 = arith.select %169, %184, %185 : vector<8x128xi1>, vector<8x128xf32>
    %187 = arith.subf %166, %186 : vector<8x128xf32>
    %c0_71 = arith.constant 0 : index
    %c0_72 = arith.constant 0 : index
    %188 = vector.load %arg14[%c0_71, %c0_72] : memref<8x128xf32, #tpu.memory_space<vmem>>, vector<8x128xf32>
    tpu.vector_store %arg14[%c0_71, %c0_72], %187 {strides = array<i32>} : memref<8x128xf32, #tpu.memory_space<vmem>>, vector<8x128xf32>,
    return
  }
  func.func @transform_0(%arg0: i32) -> (i32, i32, i32) {
    %c0_i32 = arith.constant 0 : i32
    %c0_i32_0 = arith.constant 0 : i32
    %c0_i32_1 = arith.constant 0 : i32
    return %c0_i32, %arg0, %c0_i32_0 : i32, i32, i32
  }
  func.func @transform_1(%arg0: i32) -> (i32, i32) {
    %c0_i32 = arith.constant 0 : i32
    %c0_i32_0 = arith.constant 0 : i32
    return %arg0, %c0_i32 : i32, i32
  }
  func.func @transform_2(%arg0: i32) -> (i32, i32) {
    %c0_i32 = arith.constant 0 : i32
    %c0_i32_0 = arith.constant 0 : i32
    %c0_i32_1 = arith.constant 0 : i32
    return %c0_i32, %c0_i32_0 : i32, i32
  }
  func.func @transform_3(%arg0: i32) -> (i32, i32) {
    %c0_i32 = arith.constant 0 : i32
    %c0_i32_0 = arith.constant 0 : i32
    %c0_i32_1 = arith.constant 0 : i32
    return %c0_i32, %c0_i32_0 : i32, i32
  }
  func.func @transform_4(%arg0: i32) -> (i32, i32) {
    %c0_i32 = arith.constant 0 : i32
    %c0_i32_0 = arith.constant 0 : i32
    %c0_i32_1 = arith.constant 0 : i32
    return %c0_i32, %c0_i32_0 : i32, i32
  }
  func.func @transform_5(%arg0: i32) -> (i32, i32) {
    %c0_i32 = arith.constant 0 : i32
    %c0_i32_0 = arith.constant 0 : i32
    %c0_i32_1 = arith.constant 0 : i32
    return %c0_i32, %c0_i32_0 : i32, i32
  }
  func.func @transform_6(%arg0: i32) -> (i32, i32) {
    %c0_i32 = arith.constant 0 : i32
    %c0_i32_0 = arith.constant 0 : i32
    %c0_i32_1 = arith.constant 0 : i32
    return %c0_i32, %c0_i32_0 : i32, i32
  }
  func.func @transform_7(%arg0: i32) -> (i32, i32) {
    %c0_i32 = arith.constant 0 : i32
    %c0_i32_0 = arith.constant 0 : i32
    %c0_i32_1 = arith.constant 0 : i32
    return %c0_i32, %c0_i32_0 : i32, i32
  }
  func.func @transform_8(%arg0: i32) -> (i32, i32) {
    %c0_i32 = arith.constant 0 : i32
    %c0_i32_0 = arith.constant 0 : i32
    %c0_i32_1 = arith.constant 0 : i32
    return %c0_i32, %c0_i32_0 : i32, i32
  }
  func.func @transform_9(%arg0: i32) -> (i32, i32) {
    %c0_i32 = arith.constant 0 : i32
    %c0_i32_0 = arith.constant 0 : i32
    %c0_i32_1 = arith.constant 0 : i32
    return %c0_i32, %c0_i32_0 : i32, i32
  }
  func.func @transform_10(%arg0: i32) -> (i32, i32) {
    %c0_i32 = arith.constant 0 : i32
    %c0_i32_0 = arith.constant 0 : i32
    %c0_i32_1 = arith.constant 0 : i32
    return %c0_i32, %c0_i32_0 : i32, i32
  }
  func.func @transform_11(%arg0: i32) -> (i32, i32) {
    %c0_i32 = arith.constant 0 : i32
    %c0_i32_0 = arith.constant 0 : i32
    %c0_i32_1 = arith.constant 0 : i32
    return %c0_i32, %c0_i32_0 : i32, i32
  }
  func.func @transform_12(%arg0: i32) -> (i32, i32) {
    %c0_i32 = arith.constant 0 : i32
    %c0_i32_0 = arith.constant 0 : i32
    %c0_i32_1 = arith.constant 0 : i32
    return %c0_i32, %c0_i32_0 : i32, i32
  }
  func.func @transform_13(%arg0: i32) -> (i32, i32) {
    %c0_i32 = arith.constant 0 : i32
    %c0_i32_0 = arith.constant 0 : i32
    return %arg0, %c0_i32 : i32, i32
  }
}

</mosaic_0001>

<llo_original>
// kernel: actor_critic_forward.1
$region0: #{actor_critic_forward.1}
  #allocation0 [shape = 'u32[]', space=smem, size = 0x4, offset = 0x4, fixed_abs, tag = 'smem constant byte address 0x4 - core index']
  #allocation1 [shape = 'u32[144,128]{1,0:T(1,128)}', space=vmem, size = 0x12000, scoped, tag = 'internal scratch']
  %s0 = inlined_call_operand.vmem [shape: f32[9,8,64], index: 0, kind: input, shape index: {}]
  %s1 = inlined_call_operand.vmem [shape: f32[8,8], index: 1, kind: input, shape index: {}]
  %s2 = inlined_call_operand.vmem [shape: f32[64,64], index: 2, kind: input, shape index: {}]
  %s3 = inlined_call_operand.vmem [shape: f32[1,64], index: 3, kind: input, shape index: {}]
  %s4 = inlined_call_operand.vmem [shape: f32[64,32], index: 4, kind: input, shape index: {}]
  %s5 = inlined_call_operand.vmem [shape: f32[1,32], index: 5, kind: input, shape index: {}]
  %s6 = inlined_call_operand.vmem [shape: f32[128,64], index: 6, kind: input, shape index: {}]
  %s7 = inlined_call_operand.vmem [shape: f32[1,64], index: 7, kind: input, shape index: {}]
  %s8 = inlined_call_operand.vmem [shape: f32[64,128], index: 8, kind: input, shape index: {}]
  %s9 = inlined_call_operand.vmem [shape: f32[8,128], index: 9, kind: input, shape index: {}]
  %s10 = inlined_call_operand.vmem [shape: f32[1,128], index: 10, kind: input, shape index: {}]
  %s11 = inlined_call_operand.vmem [shape: f32[128,128], index: 11, kind: input, shape index: {}]
  %s12 = inlined_call_operand.vmem [shape: f32[1,128], index: 12, kind: input, shape index: {}]
  %s13 = inlined_call_operand.vmem [shape: f32[8,128], index: 13, kind: output, shape index: {}]
  %s14 = sld [smem:[#allocation0]]
  $region62: #{actor_critic_forward.1} parent=0
    _
  %s16 = ssub.s32 1, %s14
  %s17 = scalar_select 0, %s16, %s14
  // Predicated region
  $region2: #{actor_critic_forward.1} parent=0 // pred_check
    _
  $region3: #{actor_critic_forward.1} parent=0 // pred_check_branch
    %19 = sbr.rel (0) target = $region5
  $region4: #{actor_critic_forward.1} parent=0 // pred_region
    _
  $region5: #{actor_critic_forward.1} parent=0 // pred_fallthru
    _
  // Predicated region
  $region6: #{actor_critic_forward.1} parent=0 // pred_check
    _
  $region7: #{actor_critic_forward.1} parent=0 // pred_check_branch
    %21 = sbr.rel (0) target = $region9
  $region8: #{actor_critic_forward.1} parent=0 // pred_region
    _
  $region9: #{actor_critic_forward.1} parent=0 // pred_fallthru
    _
  // Predicated region
  $region10: #{actor_critic_forward.1} parent=0 // pred_check
    _
  $region11: #{actor_critic_forward.1} parent=0 // pred_check_branch
    %23 = sbr.rel (0) target = $region13
  $region12: #{actor_critic_forward.1} parent=0 // pred_region
    _
  $region13: #{actor_critic_forward.1} parent=0 // pred_fallthru
    _
  // Predicated region
  $region14: #{actor_critic_forward.1} parent=0 // pred_check
    _
  $region15: #{actor_critic_forward.1} parent=0 // pred_check_branch
    %25 = sbr.rel (0) target = $region17
  $region16: #{actor_critic_forward.1} parent=0 // pred_region
    _
  $region17: #{actor_critic_forward.1} parent=0 // pred_fallthru
    _
  // Predicated region
  $region18: #{actor_critic_forward.1} parent=0 // pred_check
    _
  $region19: #{actor_critic_forward.1} parent=0 // pred_check_branch
    %27 = sbr.rel (0) target = $region21
  $region20: #{actor_critic_forward.1} parent=0 // pred_region
    _
  $region21: #{actor_critic_forward.1} parent=0 // pred_fallthru
    _
  // Predicated region
  $region22: #{actor_critic_forward.1} parent=0 // pred_check
    _
  $region23: #{actor_critic_forward.1} parent=0 // pred_check_branch
    %29 = sbr.rel (0) target = $region25
  $region24: #{actor_critic_forward.1} parent=0 // pred_region
    _
  $region25: #{actor_critic_forward.1} parent=0 // pred_fallthru
    _
  // Predicated region
  $region26: #{actor_critic_forward.1} parent=0 // pred_check
    _
  $region27: #{actor_critic_forward.1} parent=0 // pred_check_branch
    %31 = sbr.rel (0) target = $region29
  $region28: #{actor_critic_forward.1} parent=0 // pred_region
    _
  $region29: #{actor_critic_forward.1} parent=0 // pred_fallthru
    _
  // Predicated region
  $region30: #{actor_critic_forward.1} parent=0 // pred_check
    _
  $region31: #{actor_critic_forward.1} parent=0 // pred_check_branch
    %33 = sbr.rel (0) target = $region33
  $region32: #{actor_critic_forward.1} parent=0 // pred_region
    _
  $region33: #{actor_critic_forward.1} parent=0 // pred_fallthru
    _
  // Predicated region
  $region34: #{actor_critic_forward.1} parent=0 // pred_check
    _
  $region35: #{actor_critic_forward.1} parent=0 // pred_check_branch
    %35 = sbr.rel (0) target = $region37
  $region36: #{actor_critic_forward.1} parent=0 // pred_region
    _
  $region37: #{actor_critic_forward.1} parent=0 // pred_fallthru
    _
  // Predicated region
  $region38: #{actor_critic_forward.1} parent=0 // pred_check
    _
  $region39: #{actor_critic_forward.1} parent=0 // pred_check_branch
    %37 = sbr.rel (0) target = $region41
  $region40: #{actor_critic_forward.1} parent=0 // pred_region
    _
  $region41: #{actor_critic_forward.1} parent=0 // pred_fallthru
    _
  // Predicated region
  $region42: #{actor_critic_forward.1} parent=0 // pred_check
    _
  $region43: #{actor_critic_forward.1} parent=0 // pred_check_branch
    %39 = sbr.rel (0) target = $region45
  $region44: #{actor_critic_forward.1} parent=0 // pred_region
    _
  $region45: #{actor_critic_forward.1} parent=0 // pred_fallthru
    _
  // Predicated region
  $region46: #{actor_critic_forward.1} parent=0 // pred_check
    _
  $region47: #{actor_critic_forward.1} parent=0 // pred_check_branch
    %41 = sbr.rel (0) target = $region49
  $region48: #{actor_critic_forward.1} parent=0 // pred_region
    _
  $region49: #{actor_critic_forward.1} parent=0 // pred_fallthru
    _
  // Predicated region
  $region50: #{actor_critic_forward.1} parent=0 // pred_check
    _
  $region51: #{actor_critic_forward.1} parent=0 // pred_check_branch
    %43 = sbr.rel (0) target = $region53
  $region52: #{actor_critic_forward.1} parent=0 // pred_region
    _
  $region53: #{actor_critic_forward.1} parent=0 // pred_fallthru
    _
  %v44 = vld [vmem:[%s2] sm:$0xff]
  %v45 = vld [vmem:[%s2 + $0x8] sm:$0xff]
  %v46 = vld [vmem:[%s2 + $0x10] sm:$0xff]
  %v47 = vld [vmem:[%s2 + $0x18] sm:$0xff]
  %v48 = vld [vmem:[%s2 + $0x20] sm:$0xff]
  %v49 = vld [vmem:[%s2 + $0x28] sm:$0xff]
  %v50 = vld [vmem:[%s2 + $0x30] sm:$0xff]
  %v51 = vld [vmem:[%s2 + $0x38] sm:$0xff]
  %v52 = vld [vmem:[%s3] sm:$0x1]
  %v53 = vld [vmem:[%s0] sm:$0xff]
  %v55 = vlaneseq
  %v56 = vshrl.u32 %v55, 7
  %v57 = vsub.s32 0, %v56
  %v58 = vrot.slane %v52, %v57
  %vm60 = vcmask 523264
  %v62 = vsel %vm60, %v53, 0
  %64 = vmatprep.subr.mxu0 0.0
  %65 = vmatpush1.msra.mxu0 %v44
  %66 = vmatprep.subr.mxu0 0.0
  %67 = vmatpush1.msra.mxu0 %v45
  %68 = vmatprep.subr.mxu0 0.0
  %69 = vmatpush1.msra.mxu0 %v46
  %70 = vmatprep.subr.mxu0 0.0
  %71 = vmatpush1.msra.mxu0 %v47
  %72 = vmatprep.subr.mxu0 0.0
  %73 = vmatpush1.msra.mxu0 %v48
  %74 = vmatprep.subr.mxu0 0.0
  %75 = vmatpush1.msra.mxu0 %v49
  %76 = vmatprep.subr.mxu0 0.0
  %77 = vmatpush1.msra.mxu0 %v50
  %78 = vmatprep.subr.mxu0 0.0
  %79 = vmatpush1.msra.mxu0 %v51
  %80 = vmatprep.subr.mxu0 0.0
  %81 = vmatpush1.msra.mxu0 0.0
  %82 = vmatprep.subr.mxu0 0.0
  %83 = vmatpush1.msra.mxu0 0.0
  %84 = vmatprep.subr.mxu0 0.0
  %85 = vmatpush1.msra.mxu0 0.0
  %86 = vmatprep.subr.mxu0 0.0
  %87 = vmatpush1.msra.mxu0 0.0
  %88 = vmatprep.subr.mxu0 0.0
  %89 = vmatpush1.msra.mxu0 0.0
  %90 = vmatprep.subr.mxu0 0.0
  %91 = vmatpush1.msra.mxu0 0.0
  %92 = vmatprep.subr.mxu0 0.0
  %93 = vmatpush1.msra.mxu0 0.0
  %94 = vmatprep.subr.mxu0 0.0
  %95 = vmatpush1.msra.mxu0 0.0
  %96 = vmatprep.subr.mxu0 0.0
  %97 = vmatpush1.msra.mxu0 0.0
  %98 = vmatprep.subr.mxu0 0.0
  %99 = vmatpush1.msra.mxu0 0.0
  %100 = vmatprep.subr.mxu0 0.0
  %101 = vmatpush1.msra.mxu0 0.0
  %102 = vmatprep.subr.mxu0 0.0
  %103 = vmatpush1.msra.mxu0 0.0
  %104 = vmatprep.subr.mxu0 0.0
  %105 = vmatpush1.msra.mxu0 0.0
  %106 = vmatprep.subr.mxu0 0.0
  %107 = vmatpush1.msra.mxu0 0.0
  %108 = vmatprep.subr.mxu0 0.0
  %109 = vmatpush1.msra.mxu0 0.0
  %110 = vmatprep.subr.mxu0 0.0
  %111 = vmatpush1.msra.mxu0 0.0
  %112 = vmatprep.subr.mxu0 0.0
  %113 = vmatpush1.msra.mxu0 0.0
  %114 = vmatprep.subr.mxu0 0.0
  %115 = vmatpush1.msra.mxu0 0.0
  %116 = vmatprep.subr.mxu0 0.0
  %117 = vmatpush1.msra.mxu0 0.0
  %118 = vmatprep.subr.mxu0 0.0
  %119 = vmatpush1.msra.mxu0 0.0
  %120 = vmatprep.subr.mxu0 0.0
  %121 = vmatpush1.msra.mxu0 0.0
  %122 = vmatprep.subr.mxu0 0.0
  %123 = vmatpush1.msra.mxu0 0.0
  %124 = vmatprep.subr.mxu0 0.0
  %125 = vmatpush1.msra.mxu0 0.0
  %126 = vmatprep.subr.mxu0 0.0
  %127 = vmatpush1.msra.mxu0 0.0
  %128 = vmatprep.mubr.f32.mxu0 0.0
  %129 = vmatmul.mubr.f32.gmra.mrb[0].mxu0 %v62
  %v130 = vpop.f32.mrb[0].mxu0
  %v131 = vadd.f32 %v58, %v130
  %v132 = vpop.f32.mrb[0].mxu0
  %133 = vdwg.mxu0
  %v134 = vmax.f32 %v131, 0.0
  %136 = vrot.lane.b32.xlu0 %v134, 112
  %v137 = vpop.permute.xlu0 %136
  %v139 = vmax.f32 %v134, %v137
  %141 = vrot.lane.b32.xlu0 %v139, 96
  %v142 = vpop.permute.xlu0 %141
  %v144 = vmax.f32 %v139, %v142
  %s145 = scalar_lea.vmem %s0, 8
  %v146 = vld [vmem:[%s145] sm:$0xff]
  %v148 = vsel %vm60, %v146, 0
  %150 = vmatprep.subr.mxu0 0.0
  %151 = vmatpush1.msra.mxu0 %v44
  %152 = vmatprep.subr.mxu0 0.0
  %153 = vmatpush1.msra.mxu0 %v45
  %154 = vmatprep.subr.mxu0 0.0
  %155 = vmatpush1.msra.mxu0 %v46
  %156 = vmatprep.subr.mxu0 0.0
  %157 = vmatpush1.msra.mxu0 %v47
  %158 = vmatprep.subr.mxu0 0.0
  %159 = vmatpush1.msra.mxu0 %v48
  %160 = vmatprep.subr.mxu0 0.0
  %161 = vmatpush1.msra.mxu0 %v49
  %162 = vmatprep.subr.mxu0 0.0
  %163 = vmatpush1.msra.mxu0 %v50
  %164 = vmatprep.subr.mxu0 0.0
  %165 = vmatpush1.msra.mxu0 %v51
  %166 = vmatprep.subr.mxu0 0.0
  %167 = vmatpush1.msra.mxu0 0.0
  %168 = vmatprep.subr.mxu0 0.0
  %169 = vmatpush1.msra.mxu0 0.0
  %170 = vmatprep.subr.mxu0 0.0
  %171 = vmatpush1.msra.mxu0 0.0
  %172 = vmatprep.subr.mxu0 0.0
  %173 = vmatpush1.msra.mxu0 0.0
  %174 = vmatprep.subr.mxu0 0.0
  %175 = vmatpush1.msra.mxu0 0.0
  %176 = vmatprep.subr.mxu0 0.0
  %177 = vmatpush1.msra.mxu0 0.0
  %178 = vmatprep.subr.mxu0 0.0
  %179 = vmatpush1.msra.mxu0 0.0
  %180 = vmatprep.subr.mxu0 0.0
  %181 = vmatpush1.msra.mxu0 0.0
  %182 = vmatprep.subr.mxu0 0.0
  %183 = vmatpush1.msra.mxu0 0.0
  %184 = vmatprep.subr.mxu0 0.0
  %185 = vmatpush1.msra.mxu0 0.0
  %186 = vmatprep.subr.mxu0 0.0
  %187 = vmatpush1.msra.mxu0 0.0
  %188 = vmatprep.subr.mxu0 0.0
  %189 = vmatpush1.msra.mxu0 0.0
  %190 = vmatprep.subr.mxu0 0.0
  %191 = vmatpush1.msra.mxu0 0.0
  %192 = vmatprep.subr.mxu0 0.0
  %193 = vmatpush1.msra.mxu0 0.0
  %194 = vmatprep.subr.mxu0 0.0
  %195 = vmatpush1.msra.mxu0 0.0
  %196 = vmatprep.subr.mxu0 0.0
  %197 = vmatpush1.msra.mxu0 0.0
  %198 = vmatprep.subr.mxu0 0.0
  %199 = vmatpush1.msra.mxu0 0.0
  %200 = vmatprep.subr.mxu0 0.0
  %201 = vmatpush1.msra.mxu0 0.0
  %202 = vmatprep.subr.mxu0 0.0
  %203 = vmatpush1.msra.mxu0 0.0
  %204 = vmatprep.subr.mxu0 0.0
  %205 = vmatpush1.msra.mxu0 0.0
  %206 = vmatprep.subr.mxu0 0.0
  %207 = vmatpush1.msra.mxu0 0.0
  %208 = vmatprep.subr.mxu0 0.0
  %209 = vmatpush1.msra.mxu0 0.0
  %210 = vmatprep.subr.mxu0 0.0
  %211 = vmatpush1.msra.mxu0 0.0
  %212 = vmatprep.subr.mxu0 0.0
  %213 = vmatpush1.msra.mxu0 0.0
  %214 = vmatprep.mubr.f32.mxu0 0.0
  %215 = vmatmul.mubr.f32.gmra.mrb[0].mxu0 %v148
  %v216 = vpop.f32.mrb[0].mxu0
  %v217 = vadd.f32 %v58, %v216
  %v218 = vpop.f32.mrb[0].mxu0
  %219 = vdwg.mxu0
  %v220 = vmax.f32 %v217, 0.0
  %222 = vrot.lane.b32.xlu0 %v220, 112
  %v223 = vpop.permute.xlu0 %222
  %v225 = vmax.f32 %v220, %v223
  %227 = vrot.lane.b32.xlu0 %v225, 96
  %v228 = vpop.permute.xlu0 %227
  %v230 = vmax.f32 %v225, %v228
  %s231 = scalar_lea.vmem %s0, 16
  %v232 = vld [vmem:[%s231] sm:$0xff]
  %v234 = vsel %vm60, %v232, 0
  %236 = vmatprep.subr.mxu0 0.0
  %237 = vmatpush1.msra.mxu0 %v44
  %238 = vmatprep.subr.mxu0 0.0
  %239 = vmatpush1.msra.mxu0 %v45
  %240 = vmatprep.subr.mxu0 0.0
  %241 = vmatpush1.msra.mxu0 %v46
  %242 = vmatprep.subr.mxu0 0.0
  %243 = vmatpush1.msra.mxu0 %v47
  %244 = vmatprep.subr.mxu0 0.0
  %245 = vmatpush1.msra.mxu0 %v48
  %246 = vmatprep.subr.mxu0 0.0
  %247 = vmatpush1.msra.mxu0 %v49
  %248 = vmatprep.subr.mxu0 0.0
  %249 = vmatpush1.msra.mxu0 %v50
  %250 = vmatprep.subr.mxu0 0.0
  %251 = vmatpush1.msra.mxu0 %v51
  %252 = vmatprep.subr.mxu0 0.0
  %253 = vmatpush1.msra.mxu0 0.0
  %254 = vmatprep.subr.mxu0 0.0
  %255 = vmatpush1.msra.mxu0 0.0
  %256 = vmatprep.subr.mxu0 0.0
  %257 = vmatpush1.msra.mxu0 0.0
  %258 = vmatprep.subr.mxu0 0.0
  %259 = vmatpush1.msra.mxu0 0.0
  %260 = vmatprep.subr.mxu0 0.0
  %261 = vmatpush1.msra.mxu0 0.0
  %262 = vmatprep.subr.mxu0 0.0
  %263 = vmatpush1.msra.mxu0 0.0
  %264 = vmatprep.subr.mxu0 0.0
  %265 = vmatpush1.msra.mxu0 0.0
  %266 = vmatprep.subr.mxu0 0.0
  %267 = vmatpush1.msra.mxu0 0.0
  %268 = vmatprep.subr.mxu0 0.0
  %269 = vmatpush1.msra.mxu0 0.0
  %270 = vmatprep.subr.mxu0 0.0
  %271 = vmatpush1.msra.mxu0 0.0
  %272 = vmatprep.subr.mxu0 0.0
  %273 = vmatpush1.msra.mxu0 0.0
  %274 = vmatprep.subr.mxu0 0.0
  %275 = vmatpush1.msra.mxu0 0.0
  %276 = vmatprep.subr.mxu0 0.0
  %277 = vmatpush1.msra.mxu0 0.0
  %278 = vmatprep.subr.mxu0 0.0
  %279 = vmatpush1.msra.mxu0 0.0
  %280 = vmatprep.subr.mxu0 0.0
  %281 = vmatpush1.msra.mxu0 0.0
  %282 = vmatprep.subr.mxu0 0.0
  %283 = vmatpush1.msra.mxu0 0.0
  %284 = vmatprep.subr.mxu0 0.0
  %285 = vmatpush1.msra.mxu0 0.0
  %286 = vmatprep.subr.mxu0 0.0
  %287 = vmatpush1.msra.mxu0 0.0
  %288 = vmatprep.subr.mxu0 0.0
  %289 = vmatpush1.msra.mxu0 0.0
  %290 = vmatprep.subr.mxu0 0.0
  %291 = vmatpush1.msra.mxu0 0.0
  %292 = vmatprep.subr.mxu0 0.0
  %293 = vmatpush1.msra.mxu0 0.0
  %294 = vmatprep.subr.mxu0 0.0
  %295 = vmatpush1.msra.mxu0 0.0
  %296 = vmatprep.subr.mxu0 0.0
  %297 = vmatpush1.msra.mxu0 0.0
  %298 = vmatprep.subr.mxu0 0.0
  %299 = vmatpush1.msra.mxu0 0.0
  %300 = vmatprep.mubr.f32.mxu0 0.0
  %301 = vmatmul.mubr.f32.gmra.mrb[0].mxu0 %v234
  %v302 = vpop.f32.mrb[0].mxu0
  %v303 = vadd.f32 %v58, %v302
  %v304 = vpop.f32.mrb[0].mxu0
  %305 = vdwg.mxu0
  %v306 = vmax.f32 %v303, 0.0
  %308 = vrot.lane.b32.xlu0 %v306, 112
  %v309 = vpop.permute.xlu0 %308
  %v311 = vmax.f32 %v306, %v309
  %313 = vrot.lane.b32.xlu0 %v311, 96
  %v314 = vpop.permute.xlu0 %313
  %v316 = vmax.f32 %v311, %v314
  %s317 = scalar_lea.vmem %s0, 24
  %v318 = vld [vmem:[%s317] sm:$0xff]
  %v320 = vsel %vm60, %v318, 0
  %322 = vmatprep.subr.mxu0 0.0
  %323 = vmatpush1.msra.mxu0 %v44
  %324 = vmatprep.subr.mxu0 0.0
  %325 = vmatpush1.msra.mxu0 %v45
  %326 = vmatprep.subr.mxu0 0.0
  %327 = vmatpush1.msra.mxu0 %v46
  %328 = vmatprep.subr.mxu0 0.0
  %329 = vmatpush1.msra.mxu0 %v47
  %330 = vmatprep.subr.mxu0 0.0
  %331 = vmatpush1.msra.mxu0 %v48
  %332 = vmatprep.subr.mxu0 0.0
  %333 = vmatpush1.msra.mxu0 %v49
  %334 = vmatprep.subr.mxu0 0.0
  %335 = vmatpush1.msra.mxu0 %v50
  %336 = vmatprep.subr.mxu0 0.0
  %337 = vmatpush1.msra.mxu0 %v51
  %338 = vmatprep.subr.mxu0 0.0
  %339 = vmatpush1.msra.mxu0 0.0
  %340 = vmatprep.subr.mxu0 0.0
  %341 = vmatpush1.msra.mxu0 0.0
  %342 = vmatprep.subr.mxu0 0.0
  %343 = vmatpush1.msra.mxu0 0.0
  %344 = vmatprep.subr.mxu0 0.0
  %345 = vmatpush1.msra.mxu0 0.0
  %346 = vmatprep.subr.mxu0 0.0
  %347 = vmatpush1.msra.mxu0 0.0
  %348 = vmatprep.subr.mxu0 0.0
  %349 = vmatpush1.msra.mxu0 0.0
  %350 = vmatprep.subr.mxu0 0.0
  %351 = vmatpush1.msra.mxu0 0.0
  %352 = vmatprep.subr.mxu0 0.0
  %353 = vmatpush1.msra.mxu0 0.0
  %354 = vmatprep.subr.mxu0 0.0
  %355 = vmatpush1.msra.mxu0 0.0
  %356 = vmatprep.subr.mxu0 0.0
  %357 = vmatpush1.msra.mxu0 0.0
  %358 = vmatprep.subr.mxu0 0.0
  %359 = vmatpush1.msra.mxu0 0.0
  %360 = vmatprep.subr.mxu0 0.0
  %361 = vmatpush1.msra.mxu0 0.0
  %362 = vmatprep.subr.mxu0 0.0
  %363 = vmatpush1.msra.mxu0 0.0
  %364 = vmatprep.subr.mxu0 0.0
  %365 = vmatpush1.msra.mxu0 0.0
  %366 = vmatprep.subr.mxu0 0.0
  %367 = vmatpush1.msra.mxu0 0.0
  %368 = vmatprep.subr.mxu0 0.0
  %369 = vmatpush1.msra.mxu0 0.0
  %370 = vmatprep.subr.mxu0 0.0
  %371 = vmatpush1.msra.mxu0 0.0
  %372 = vmatprep.subr.mxu0 0.0
  %373 = vmatpush1.msra.mxu0 0.0
  %374 = vmatprep.subr.mxu0 0.0
  %375 = vmatpush1.msra.mxu0 0.0
  %376 = vmatprep.subr.mxu0 0.0
  %377 = vmatpush1.msra.mxu0 0.0
  %378 = vmatprep.subr.mxu0 0.0
  %379 = vmatpush1.msra.mxu0 0.0
  %380 = vmatprep.subr.mxu0 0.0
  %381 = vmatpush1.msra.mxu0 0.0
  %382 = vmatprep.subr.mxu0 0.0
  %383 = vmatpush1.msra.mxu0 0.0
  %384 = vmatprep.subr.mxu0 0.0
  %385 = vmatpush1.msra.mxu0 0.0
  %386 = vmatprep.mubr.f32.mxu0 0.0
  %387 = vmatmul.mubr.f32.gmra.mrb[0].mxu0 %v320
  %v388 = vpop.f32.mrb[0].mxu0
  %v389 = vadd.f32 %v58, %v388
  %v390 = vpop.f32.mrb[0].mxu0
  %391 = vdwg.mxu0
  %v392 = vmax.f32 %v389, 0.0
  %394 = vrot.lane.b32.xlu0 %v392, 112
  %v395 = vpop.permute.xlu0 %394
  %v397 = vmax.f32 %v392, %v395
  %399 = vrot.lane.b32.xlu0 %v397, 96
  %v400 = vpop.permute.xlu0 %399
  %v402 = vmax.f32 %v397, %v400
  %s403 = scalar_lea.vmem %s0, 32
  %v404 = vld [vmem:[%s403] sm:$0xff]
  %v406 = vsel %vm60, %v404, 0
  %408 = vmatprep.subr.mxu0 0.0
  %409 = vmatpush1.msra.mxu0 %v44
  %410 = vmatprep.subr.mxu0 0.0
  %411 = vmatpush1.msra.mxu0 %v45
  %412 = vmatprep.subr.mxu0 0.0
  %413 = vmatpush1.msra.mxu0 %v46
  %414 = vmatprep.subr.mxu0 0.0
  %415 = vmatpush1.msra.mxu0 %v47
  %416 = vmatprep.subr.mxu0 0.0
  %417 = vmatpush1.msra.mxu0 %v48
  %418 = vmatprep.subr.mxu0 0.0
  %419 = vmatpush1.msra.mxu0 %v49
  %420 = vmatprep.subr.mxu0 0.0
  %421 = vmatpush1.msra.mxu0 %v50
  %422 = vmatprep.subr.mxu0 0.0
  %423 = vmatpush1.msra.mxu0 %v51
  %424 = vmatprep.subr.mxu0 0.0
  %425 = vmatpush1.msra.mxu0 0.0
  %426 = vmatprep.subr.mxu0 0.0
  %427 = vmatpush1.msra.mxu0 0.0
  %428 = vmatprep.subr.mxu0 0.0
  %429 = vmatpush1.msra.mxu0 0.0
  %430 = vmatprep.subr.mxu0 0.0
  %431 = vmatpush1.msra.mxu0 0.0
  %432 = vmatprep.subr.mxu0 0.0
  %433 = vmatpush1.msra.mxu0 0.0
  %434 = vmatprep.subr.mxu0 0.0
  %435 = vmatpush1.msra.mxu0 0.0
  %436 = vmatprep.subr.mxu0 0.0
  %437 = vmatpush1.msra.mxu0 0.0
  %438 = vmatprep.subr.mxu0 0.0
  %439 = vmatpush1.msra.mxu0 0.0
  %440 = vmatprep.subr.mxu0 0.0
  %441 = vmatpush1.msra.mxu0 0.0
  %442 = vmatprep.subr.mxu0 0.0
  %443 = vmatpush1.msra.mxu0 0.0
  %444 = vmatprep.subr.mxu0 0.0
  %445 = vmatpush1.msra.mxu0 0.0
  %446 = vmatprep.subr.mxu0 0.0
  %447 = vmatpush1.msra.mxu0 0.0
  %448 = vmatprep.subr.mxu0 0.0
  %449 = vmatpush1.msra.mxu0 0.0
  %450 = vmatprep.subr.mxu0 0.0
  %451 = vmatpush1.msra.mxu0 0.0
  %452 = vmatprep.subr.mxu0 0.0
  %453 = vmatpush1.msra.mxu0 0.0
  %454 = vmatprep.subr.mxu0 0.0
  %455 = vmatpush1.msra.mxu0 0.0
  %456 = vmatprep.subr.mxu0 0.0
  %457 = vmatpush1.msra.mxu0 0.0
  %458 = vmatprep.subr.mxu0 0.0
  %459 = vmatpush1.msra.mxu0 0.0
  %460 = vmatprep.subr.mxu0 0.0
  %461 = vmatpush1.msra.mxu0 0.0
  %462 = vmatprep.subr.mxu0 0.0
  %463 = vmatpush1.msra.mxu0 0.0
  %464 = vmatprep.subr.mxu0 0.0
  %465 = vmatpush1.msra.mxu0 0.0
  %466 = vmatprep.subr.mxu0 0.0
  %467 = vmatpush1.msra.mxu0 0.0
  %468 = vmatprep.subr.mxu0 0.0
  %469 = vmatpush1.msra.mxu0 0.0
  %470 = vmatprep.subr.mxu0 0.0
  %471 = vmatpush1.msra.mxu0 0.0
  %472 = vmatprep.mubr.f32.mxu0 0.0
  %473 = vmatmul.mubr.f32.gmra.mrb[0].mxu0 %v406
  %v474 = vpop.f32.mrb[0].mxu0
  %v475 = vadd.f32 %v58, %v474
  %v476 = vpop.f32.mrb[0].mxu0
  %477 = vdwg.mxu0
  %v478 = vmax.f32 %v475, 0.0
  %480 = vrot.lane.b32.xlu0 %v478, 112
  %v481 = vpop.permute.xlu0 %480
  %v483 = vmax.f32 %v478, %v481
  %485 = vrot.lane.b32.xlu0 %v483, 96
  %v486 = vpop.permute.xlu0 %485
  %v488 = vmax.f32 %v483, %v486
  %s489 = scalar_lea.vmem %s0, 40
  %v490 = vld [vmem:[%s489] sm:$0xff]
  %v492 = vsel %vm60, %v490, 0
  %494 = vmatprep.subr.mxu0 0.0
  %495 = vmatpush1.msra.mxu0 %v44
  %496 = vmatprep.subr.mxu0 0.0
  %497 = vmatpush1.msra.mxu0 %v45
  %498 = vmatprep.subr.mxu0 0.0
  %499 = vmatpush1.msra.mxu0 %v46
  %500 = vmatprep.subr.mxu0 0.0
  %501 = vmatpush1.msra.mxu0 %v47
  %502 = vmatprep.subr.mxu0 0.0
  %503 = vmatpush1.msra.mxu0 %v48
  %504 = vmatprep.subr.mxu0 0.0
  %505 = vmatpush1.msra.mxu0 %v49
  %506 = vmatprep.subr.mxu0 0.0
  %507 = vmatpush1.msra.mxu0 %v50
  %508 = vmatprep.subr.mxu0 0.0
  %509 = vmatpush1.msra.mxu0 %v51
  %510 = vmatprep.subr.mxu0 0.0
  %511 = vmatpush1.msra.mxu0 0.0
  %512 = vmatprep.subr.mxu0 0.0
  %513 = vmatpush1.msra.mxu0 0.0
  %514 = vmatprep.subr.mxu0 0.0
  %515 = vmatpush1.msra.mxu0 0.0
  %516 = vmatprep.subr.mxu0 0.0
  %517 = vmatpush1.msra.mxu0 0.0
  %518 = vmatprep.subr.mxu0 0.0
  %519 = vmatpush1.msra.mxu0 0.0
  %520 = vmatprep.subr.mxu0 0.0
  %521 = vmatpush1.msra.mxu0 0.0
  %522 = vmatprep.subr.mxu0 0.0
  %523 = vmatpush1.msra.mxu0 0.0
  %524 = vmatprep.subr.mxu0 0.0
  %525 = vmatpush1.msra.mxu0 0.0
  %526 = vmatprep.subr.mxu0 0.0
  %527 = vmatpush1.msra.mxu0 0.0
  %528 = vmatprep.subr.mxu0 0.0
  %529 = vmatpush1.msra.mxu0 0.0
  %530 = vmatprep.subr.mxu0 0.0
  %531 = vmatpush1.msra.mxu0 0.0
  %532 = vmatprep.subr.mxu0 0.0
  %533 = vmatpush1.msra.mxu0 0.0
  %534 = vmatprep.subr.mxu0 0.0
  %535 = vmatpush1.msra.mxu0 0.0
  %536 = vmatprep.subr.mxu0 0.0
  %537 = vmatpush1.msra.mxu0 0.0
  %538 = vmatprep.subr.mxu0 0.0
  %539 = vmatpush1.msra.mxu0 0.0
  %540 = vmatprep.subr.mxu0 0.0
  %541 = vmatpush1.msra.mxu0 0.0
  %542 = vmatprep.subr.mxu0 0.0
  %543 = vmatpush1.msra.mxu0 0.0
  %544 = vmatprep.subr.mxu0 0.0
  %545 = vmatpush1.msra.mxu0 0.0
  %546 = vmatprep.subr.mxu0 0.0
  %547 = vmatpush1.msra.mxu0 0.0
  %548 = vmatprep.subr.mxu0 0.0
  %549 = vmatpush1.msra.mxu0 0.0
  %550 = vmatprep.subr.mxu0 0.0
  %551 = vmatpush1.msra.mxu0 0.0
  %552 = vmatprep.subr.mxu0 0.0
  %553 = vmatpush1.msra.mxu0 0.0
  %554 = vmatprep.subr.mxu0 0.0
  %555 = vmatpush1.msra.mxu0 0.0
  %556 = vmatprep.subr.mxu0 0.0
  %557 = vmatpush1.msra.mxu0 0.0
  %558 = vmatprep.mubr.f32.mxu0 0.0
  %559 = vmatmul.mubr.f32.gmra.mrb[0].mxu0 %v492
  %v560 = vpop.f32.mrb[0].mxu0
  %v561 = vadd.f32 %v58, %v560
  %v562 = vpop.f32.mrb[0].mxu0
  %563 = vdwg.mxu0
  %v564 = vmax.f32 %v561, 0.0
  %566 = vrot.lane.b32.xlu0 %v564, 112
  %v567 = vpop.permute.xlu0 %566
  %v569 = vmax.f32 %v564, %v567
  %571 = vrot.lane.b32.xlu0 %v569, 96
  %v572 = vpop.permute.xlu0 %571
  %v574 = vmax.f32 %v569, %v572
  %s575 = scalar_lea.vmem %s0, 48
  %v576 = vld [vmem:[%s575] sm:$0xff]
  %v578 = vsel %vm60, %v576, 0
  %580 = vmatprep.subr.mxu0 0.0
  %581 = vmatpush1.msra.mxu0 %v44
  %582 = vmatprep.subr.mxu0 0.0
  %583 = vmatpush1.msra.mxu0 %v45
  %584 = vmatprep.subr.mxu0 0.0
  %585 = vmatpush1.msra.mxu0 %v46
  %586 = vmatprep.subr.mxu0 0.0
  %587 = vmatpush1.msra.mxu0 %v47
  %588 = vmatprep.subr.mxu0 0.0
  %589 = vmatpush1.msra.mxu0 %v48
  %590 = vmatprep.subr.mxu0 0.0
  %591 = vmatpush1.msra.mxu0 %v49
  %592 = vmatprep.subr.mxu0 0.0
  %593 = vmatpush1.msra.mxu0 %v50
  %594 = vmatprep.subr.mxu0 0.0
  %595 = vmatpush1.msra.mxu0 %v51
  %596 = vmatprep.subr.mxu0 0.0
  %597 = vmatpush1.msra.mxu0 0.0
  %598 = vmatprep.subr.mxu0 0.0
  %599 = vmatpush1.msra.mxu0 0.0
  %600 = vmatprep.subr.mxu0 0.0
  %601 = vmatpush1.msra.mxu0 0.0
  %602 = vmatprep.subr.mxu0 0.0
  %603 = vmatpush1.msra.mxu0 0.0
  %604 = vmatprep.subr.mxu0 0.0
  %605 = vmatpush1.msra.mxu0 0.0
  %606 = vmatprep.subr.mxu0 0.0
  %607 = vmatpush1.msra.mxu0 0.0
  %608 = vmatprep.subr.mxu0 0.0
  %609 = vmatpush1.msra.mxu0 0.0
  %610 = vmatprep.subr.mxu0 0.0
  %611 = vmatpush1.msra.mxu0 0.0
  %612 = vmatprep.subr.mxu0 0.0
  %613 = vmatpush1.msra.mxu0 0.0
  %614 = vmatprep.subr.mxu0 0.0
  %615 = vmatpush1.msra.mxu0 0.0
  %616 = vmatprep.subr.mxu0 0.0
  %617 = vmatpush1.msra.mxu0 0.0
  %618 = vmatprep.subr.mxu0 0.0
  %619 = vmatpush1.msra.mxu0 0.0
  %620 = vmatprep.subr.mxu0 0.0
  %621 = vmatpush1.msra.mxu0 0.0
  %622 = vmatprep.subr.mxu0 0.0
  %623 = vmatpush1.msra.mxu0 0.0
  %624 = vmatprep.subr.mxu0 0.0
  %625 = vmatpush1.msra.mxu0 0.0
  %626 = vmatprep.subr.mxu0 0.0
  %627 = vmatpush1.msra.mxu0 0.0
  %628 = vmatprep.subr.mxu0 0.0
  %629 = vmatpush1.msra.mxu0 0.0
  %630 = vmatprep.subr.mxu0 0.0
  %631 = vmatpush1.msra.mxu0 0.0
  %632 = vmatprep.subr.mxu0 0.0
  %633 = vmatpush1.msra.mxu0 0.0
  %634 = vmatprep.subr.mxu0 0.0
  %635 = vmatpush1.msra.mxu0 0.0
  %636 = vmatprep.subr.mxu0 0.0
  %637 = vmatpush1.msra.mxu0 0.0
  %638 = vmatprep.subr.mxu0 0.0
  %639 = vmatpush1.msra.mxu0 0.0
  %640 = vmatprep.subr.mxu0 0.0
  %641 = vmatpush1.msra.mxu0 0.0
  %642 = vmatprep.subr.mxu0 0.0
  %643 = vmatpush1.msra.mxu0 0.0
  %644 = vmatprep.mubr.f32.mxu0 0.0
  %645 = vmatmul.mubr.f32.gmra.mrb[0].mxu0 %v578
  %v646 = vpop.f32.mrb[0].mxu0
  %v647 = vadd.f32 %v58, %v646
  %v648 = vpop.f32.mrb[0].mxu0
  %649 = vdwg.mxu0
  %v650 = vmax.f32 %v647, 0.0
  %652 = vrot.lane.b32.xlu0 %v650, 112
  %v653 = vpop.permute.xlu0 %652
  %v655 = vmax.f32 %v650, %v653
  %657 = vrot.lane.b32.xlu0 %v655, 96
  %v658 = vpop.permute.xlu0 %657
  %v660 = vmax.f32 %v655, %v658
  %s661 = scalar_lea.vmem %s0, 56
  %v662 = vld [vmem:[%s661] sm:$0xff]
  %v664 = vsel %vm60, %v662, 0
  %666 = vmatprep.subr.mxu0 0.0
  %667 = vmatpush1.msra.mxu0 %v44
  %668 = vmatprep.subr.mxu0 0.0
  %669 = vmatpush1.msra.mxu0 %v45
  %670 = vmatprep.subr.mxu0 0.0
  %671 = vmatpush1.msra.mxu0 %v46
  %672 = vmatprep.subr.mxu0 0.0
  %673 = vmatpush1.msra.mxu0 %v47
  %674 = vmatprep.subr.mxu0 0.0
  %675 = vmatpush1.msra.mxu0 %v48
  %676 = vmatprep.subr.mxu0 0.0
  %677 = vmatpush1.msra.mxu0 %v49
  %678 = vmatprep.subr.mxu0 0.0
  %679 = vmatpush1.msra.mxu0 %v50
  %680 = vmatprep.subr.mxu0 0.0
  %681 = vmatpush1.msra.mxu0 %v51
  %682 = vmatprep.subr.mxu0 0.0
  %683 = vmatpush1.msra.mxu0 0.0
  %684 = vmatprep.subr.mxu0 0.0
  %685 = vmatpush1.msra.mxu0 0.0
  %686 = vmatprep.subr.mxu0 0.0
  %687 = vmatpush1.msra.mxu0 0.0
  %688 = vmatprep.subr.mxu0 0.0
  %689 = vmatpush1.msra.mxu0 0.0
  %690 = vmatprep.subr.mxu0 0.0
  %691 = vmatpush1.msra.mxu0 0.0
  %692 = vmatprep.subr.mxu0 0.0
  %693 = vmatpush1.msra.mxu0 0.0
  %694 = vmatprep.subr.mxu0 0.0
  %695 = vmatpush1.msra.mxu0 0.0
  %696 = vmatprep.subr.mxu0 0.0
  %697 = vmatpush1.msra.mxu0 0.0
  %698 = vmatprep.subr.mxu0 0.0
  %699 = vmatpush1.msra.mxu0 0.0
  %700 = vmatprep.subr.mxu0 0.0
  %701 = vmatpush1.msra.mxu0 0.0
  %702 = vmatprep.subr.mxu0 0.0
  %703 = vmatpush1.msra.mxu0 0.0
  %704 = vmatprep.subr.mxu0 0.0
  %705 = vmatpush1.msra.mxu0 0.0
  %706 = vmatprep.subr.mxu0 0.0
  %707 = vmatpush1.msra.mxu0 0.0
  %708 = vmatprep.subr.mxu0 0.0
  %709 = vmatpush1.msra.mxu0 0.0
  %710 = vmatprep.subr.mxu0 0.0
  %711 = vmatpush1.msra.mxu0 0.0
  %712 = vmatprep.subr.mxu0 0.0
  %713 = vmatpush1.msra.mxu0 0.0
  %714 = vmatprep.subr.mxu0 0.0
  %715 = vmatpush1.msra.mxu0 0.0
  %716 = vmatprep.subr.mxu0 0.0
  %717 = vmatpush1.msra.mxu0 0.0
  %718 = vmatprep.subr.mxu0 0.0
  %719 = vmatpush1.msra.mxu0 0.0
  %720 = vmatprep.subr.mxu0 0.0
  %721 = vmatpush1.msra.mxu0 0.0
  %722 = vmatprep.subr.mxu0 0.0
  %723 = vmatpush1.msra.mxu0 0.0
  %724 = vmatprep.subr.mxu0 0.0
  %725 = vmatpush1.msra.mxu0 0.0
  %726 = vmatprep.subr.mxu0 0.0
  %727 = vmatpush1.msra.mxu0 0.0
  %728 = vmatprep.subr.mxu0 0.0
  %729 = vmatpush1.msra.mxu0 0.0
  %730 = vmatprep.mubr.f32.mxu0 0.0
  %731 = vmatmul.mubr.f32.gmra.mrb[0].mxu0 %v664
  %v732 = vpop.f32.mrb[0].mxu0
  %v733 = vadd.f32 %v58, %v732
  %v734 = vpop.f32.mrb[0].mxu0
  %735 = vdwg.mxu0
  %v736 = vmax.f32 %v733, 0.0
  %738 = vrot.lane.b32.xlu0 %v736, 112
  %v739 = vpop.permute.xlu0 %738
  %v741 = vmax.f32 %v736, %v739
  %743 = vrot.lane.b32.xlu0 %v741, 96
  %v744 = vpop.permute.xlu0 %743
  %v746 = vmax.f32 %v741, %v744
  %s747 = scalar_lea.vmem %s0, 64
  %v748 = vld [vmem:[%s747] sm:$0xff]
  %v750 = vsel %vm60, %v748, 0
  %752 = vmatprep.subr.mxu0 0.0
  %753 = vmatpush1.msra.mxu0 %v44
  %754 = vmatprep.subr.mxu0 0.0
  %755 = vmatpush1.msra.mxu0 %v45
  %756 = vmatprep.subr.mxu0 0.0
  %757 = vmatpush1.msra.mxu0 %v46
  %758 = vmatprep.subr.mxu0 0.0
  %759 = vmatpush1.msra.mxu0 %v47
  %760 = vmatprep.subr.mxu0 0.0
  %761 = vmatpush1.msra.mxu0 %v48
  %762 = vmatprep.subr.mxu0 0.0
  %763 = vmatpush1.msra.mxu0 %v49
  %764 = vmatprep.subr.mxu0 0.0
  %765 = vmatpush1.msra.mxu0 %v50
  %766 = vmatprep.subr.mxu0 0.0
  %767 = vmatpush1.msra.mxu0 %v51
  %768 = vmatprep.subr.mxu0 0.0
  %769 = vmatpush1.msra.mxu0 0.0
  %770 = vmatprep.subr.mxu0 0.0
  %771 = vmatpush1.msra.mxu0 0.0
  %772 = vmatprep.subr.mxu0 0.0
  %773 = vmatpush1.msra.mxu0 0.0
  %774 = vmatprep.subr.mxu0 0.0
  %775 = vmatpush1.msra.mxu0 0.0
  %776 = vmatprep.subr.mxu0 0.0
  %777 = vmatpush1.msra.mxu0 0.0
  %778 = vmatprep.subr.mxu0 0.0
  %779 = vmatpush1.msra.mxu0 0.0
  %780 = vmatprep.subr.mxu0 0.0
  %781 = vmatpush1.msra.mxu0 0.0
  %782 = vmatprep.subr.mxu0 0.0
  %783 = vmatpush1.msra.mxu0 0.0
  %784 = vmatprep.subr.mxu0 0.0
  %785 = vmatpush1.msra.mxu0 0.0
  %786 = vmatprep.subr.mxu0 0.0
  %787 = vmatpush1.msra.mxu0 0.0
  %788 = vmatprep.subr.mxu0 0.0
  %789 = vmatpush1.msra.mxu0 0.0
  %790 = vmatprep.subr.mxu0 0.0
  %791 = vmatpush1.msra.mxu0 0.0
  %792 = vmatprep.subr.mxu0 0.0
  %793 = vmatpush1.msra.mxu0 0.0
  %794 = vmatprep.subr.mxu0 0.0
  %795 = vmatpush1.msra.mxu0 0.0
  %796 = vmatprep.subr.mxu0 0.0
  %797 = vmatpush1.msra.mxu0 0.0
  %798 = vmatprep.subr.mxu0 0.0
  %799 = vmatpush1.msra.mxu0 0.0
  %800 = vmatprep.subr.mxu0 0.0
  %801 = vmatpush1.msra.mxu0 0.0
  %802 = vmatprep.subr.mxu0 0.0
  %803 = vmatpush1.msra.mxu0 0.0
  %804 = vmatprep.subr.mxu0 0.0
  %805 = vmatpush1.msra.mxu0 0.0
  %806 = vmatprep.subr.mxu0 0.0
  %807 = vmatpush1.msra.mxu0 0.0
  %808 = vmatprep.subr.mxu0 0.0
  %809 = vmatpush1.msra.mxu0 0.0
  %810 = vmatprep.subr.mxu0 0.0
  %811 = vmatpush1.msra.mxu0 0.0
  %812 = vmatprep.subr.mxu0 0.0
  %813 = vmatpush1.msra.mxu0 0.0
  %814 = vmatprep.subr.mxu0 0.0
  %815 = vmatpush1.msra.mxu0 0.0
  %816 = vmatprep.mubr.f32.mxu0 0.0
  %817 = vmatmul.mubr.f32.gmra.mrb[0].mxu0 %v750
  %v818 = vpop.f32.mrb[0].mxu0
  %v819 = vadd.f32 %v58, %v818
  %v820 = vpop.f32.mrb[0].mxu0
  %821 = vdwg.mxu0
  %v822 = vmax.f32 %v819, 0.0
  %824 = vrot.lane.b32.xlu0 %v822, 112
  %v825 = vpop.permute.xlu0 %824
  %v827 = vmax.f32 %v822, %v825
  %829 = vrot.lane.b32.xlu0 %v827, 96
  %v830 = vpop.permute.xlu0 %829
  %v832 = vmax.f32 %v827, %v830
  %834 = vrot.lane.b32.xlu0 %v230, 16
  %v835 = vpop.permute.xlu0 %834
  %838 = vrot.lane.b32.xlu0 %v402, 32
  %v839 = vpop.permute.xlu0 %838
  %842 = vrot.lane.b32.xlu0 %v488, 48
  %v843 = vpop.permute.xlu0 %842
  %vm845 = vcmask 130048
  %v846 = vsel %vm845, %v144, %v835
  %vm847 = vcmask 261120
  %v848 = vsel %vm847, %v846, %v839
  %vm849 = vcmask 392192
  %v850 = vsel %vm849, %v848, %v843
  %852 = vrot.lane.b32.xlu0 %v316, 16
  %v853 = vpop.permute.xlu0 %852
  %855 = vrot.lane.b32.xlu0 %v488, 32
  %v856 = vpop.permute.xlu0 %855
  %859 = vrot.lane.b32.xlu0 %v574, 48
  %v860 = vpop.permute.xlu0 %859
  %v862 = vsel %vm845, %v230, %v853
  %v863 = vsel %vm847, %v862, %v856
  %v864 = vsel %vm849, %v863, %v860
  %865 = vrot.lane.b32.xlu0 %v488, 16
  %v866 = vpop.permute.xlu0 %865
  %869 = vrot.lane.b32.xlu0 %v660, 32
  %v870 = vpop.permute.xlu0 %869
  %873 = vrot.lane.b32.xlu0 %v746, 48
  %v874 = vpop.permute.xlu0 %873
  %v876 = vsel %vm845, %v402, %v866
  %v877 = vsel %vm847, %v876, %v870
  %v878 = vsel %vm849, %v877, %v874
  %879 = vrot.lane.b32.xlu0 %v574, 16
  %v880 = vpop.permute.xlu0 %879
  %882 = vrot.lane.b32.xlu0 %v746, 32
  %v883 = vpop.permute.xlu0 %882
  %886 = vrot.lane.b32.xlu0 %v832, 48
  %v887 = vpop.permute.xlu0 %886
  %v889 = vsel %vm845, %v488, %v880
  %v890 = vsel %vm847, %v889, %v883
  %v891 = vsel %vm849, %v890, %v887
  %v892 = vld [vmem:[%s4] sm:$0xff]
  %v893 = vld [vmem:[%s4 + $0x8] sm:$0xff]
  %v894 = vld [vmem:[%s4 + $0x10] sm:$0xff]
  %v895 = vld [vmem:[%s4 + $0x18] sm:$0xff]
  %v896 = vld [vmem:[%s4 + $0x20] sm:$0xff]
  %v897 = vld [vmem:[%s4 + $0x28] sm:$0xff]
  %v898 = vld [vmem:[%s4 + $0x30] sm:$0xff]
  %v899 = vld [vmem:[%s4 + $0x38] sm:$0xff]
  %v900 = vld [vmem:[%s5] sm:$0x1]
  %v902 = vlaneseq
  %v903 = vshrl.u32 %v902, 7
  %v904 = vsub.s32 0, %v903
  %v905 = vrot.slane %v900, %v904
  %v908 = vsel %vm60, %v850, 0
  %v911 = vsel %vm60, %v864, 0
  %v914 = vsel %vm60, %v878, 0
  %v917 = vsel %vm60, %v891, 0
  %919 = vmatprep.subr.mxu0 0.0
  %920 = vmatpush1.msra.mxu0 %v892
  %921 = vmatprep.subr.mxu0 0.0
  %922 = vmatpush1.msra.mxu0 %v893
  %923 = vmatprep.subr.mxu0 0.0
  %924 = vmatpush1.msra.mxu0 %v894
  %925 = vmatprep.subr.mxu0 0.0
  %926 = vmatpush1.msra.mxu0 %v895
  %927 = vmatprep.subr.mxu0 0.0
  %928 = vmatpush1.msra.mxu0 %v896
  %929 = vmatprep.subr.mxu0 0.0
  %930 = vmatpush1.msra.mxu0 %v897
  %931 = vmatprep.subr.mxu0 0.0
  %932 = vmatpush1.msra.mxu0 %v898
  %933 = vmatprep.subr.mxu0 0.0
  %934 = vmatpush1.msra.mxu0 %v899
  %935 = vmatprep.subr.mxu0 0.0
  %936 = vmatpush1.msra.mxu0 0.0
  %937 = vmatprep.subr.mxu0 0.0
  %938 = vmatpush1.msra.mxu0 0.0
  %939 = vmatprep.subr.mxu0 0.0
  %940 = vmatpush1.msra.mxu0 0.0
  %941 = vmatprep.subr.mxu0 0.0
  %942 = vmatpush1.msra.mxu0 0.0
  %943 = vmatprep.subr.mxu0 0.0
  %944 = vmatpush1.msra.mxu0 0.0
  %945 = vmatprep.subr.mxu0 0.0
  %946 = vmatpush1.msra.mxu0 0.0
  %947 = vmatprep.subr.mxu0 0.0
  %948 = vmatpush1.msra.mxu0 0.0
  %949 = vmatprep.subr.mxu0 0.0
  %950 = vmatpush1.msra.mxu0 0.0
  %951 = vmatprep.subr.mxu0 0.0
  %952 = vmatpush1.msra.mxu0 0.0
  %953 = vmatprep.subr.mxu0 0.0
  %954 = vmatpush1.msra.mxu0 0.0
  %955 = vmatprep.subr.mxu0 0.0
  %956 = vmatpush1.msra.mxu0 0.0
  %957 = vmatprep.subr.mxu0 0.0
  %958 = vmatpush1.msra.mxu0 0.0
  %959 = vmatprep.subr.mxu0 0.0
  %960 = vmatpush1.msra.mxu0 0.0
  %961 = vmatprep.subr.mxu0 0.0
  %962 = vmatpush1.msra.mxu0 0.0
  %963 = vmatprep.subr.mxu0 0.0
  %964 = vmatpush1.msra.mxu0 0.0
  %965 = vmatprep.subr.mxu0 0.0
  %966 = vmatpush1.msra.mxu0 0.0
  %967 = vmatprep.subr.mxu0 0.0
  %968 = vmatpush1.msra.mxu0 0.0
  %969 = vmatprep.subr.mxu0 0.0
  %970 = vmatpush1.msra.mxu0 0.0
  %971 = vmatprep.subr.mxu0 0.0
  %972 = vmatpush1.msra.mxu0 0.0
  %973 = vmatprep.subr.mxu0 0.0
  %974 = vmatpush1.msra.mxu0 0.0
  %975 = vmatprep.subr.mxu0 0.0
  %976 = vmatpush1.msra.mxu0 0.0
  %977 = vmatprep.subr.mxu0 0.0
  %978 = vmatpush1.msra.mxu0 0.0
  %979 = vmatprep.subr.mxu0 0.0
  %980 = vmatpush1.msra.mxu0 0.0
  %981 = vmatprep.subr.mxu0 0.0
  %982 = vmatpush1.msra.mxu0 0.0
  %983 = vmatprep.mubr.f32.mxu0 0.0
  %984 = vmatmul.mubr.f32.gmra.mrb[0].mxu0 %v908
  %v985 = vpop.f32.mrb[0].mxu0
  %v986 = vadd.f32 %v905, %v985
  %v987 = vpop.f32.mrb[0].mxu0
  %988 = vmatprep.mubr.f32.mxu0 0.0
  %989 = vmatmul.mubr.f32.gmra.mrb[0].mxu0 %v911
  %v990 = vpop.f32.mrb[0].mxu0
  %v991 = vadd.f32 %v905, %v990
  %v992 = vpop.f32.mrb[0].mxu0
  %993 = vmatprep.mubr.f32.mxu0 0.0
  %994 = vmatmul.mubr.f32.gmra.mrb[0].mxu0 %v914
  %v995 = vpop.f32.mrb[0].mxu0
  %v996 = vadd.f32 %v905, %v995
  %v997 = vpop.f32.mrb[0].mxu0
  %998 = vmatprep.mubr.f32.mxu0 0.0
  %999 = vmatmul.mubr.f32.gmra.mrb[0].mxu0 %v917
  %v1000 = vpop.f32.mrb[0].mxu0
  %v1001 = vadd.f32 %v905, %v1000
  %v1002 = vpop.f32.mrb[0].mxu0
  %1003 = vdwg.mxu0
  %v1004 = vmax.f32 %v986, 0.0
  %v1005 = vmax.f32 %v991, 0.0
  %v1006 = vmax.f32 %v996, 0.0
  %v1007 = vmax.f32 %v1001, 0.0
  %1009 = vrot.lane.b32.xlu0 %v1005, 32
  %v1010 = vpop.permute.xlu0 %1009
  %1013 = vrot.lane.b32.xlu0 %v1006, 64
  %v1014 = vpop.permute.xlu0 %1013
  %1017 = vrot.lane.b32.xlu0 %v1007, 96
  %v1018 = vpop.permute.xlu0 %1017
  %v1020 = vsel %vm847, %v1004, %v1010
  %v1021 = vsel %vm60, %v1020, %v1014
  %vm1022 = vcmask 785408
  %v1023 = vsel %vm1022, %v1021, %v1018
  %v1024 = vld [vmem:[%s6] sm:$0xff]
  %v1025 = vld [vmem:[%s6 + $0x8] sm:$0xff]
  %v1026 = vld [vmem:[%s6 + $0x10] sm:$0xff]
  %v1027 = vld [vmem:[%s6 + $0x18] sm:$0xff]
  %v1028 = vld [vmem:[%s6 + $0x20] sm:$0xff]
  %v1029 = vld [vmem:[%s6 + $0x28] sm:$0xff]
  %v1030 = vld [vmem:[%s6 + $0x30] sm:$0xff]
  %v1031 = vld [vmem:[%s6 + $0x38] sm:$0xff]
  %v1032 = vld [vmem:[%s6 + $0x40] sm:$0xff]
  %v1033 = vld [vmem:[%s6 + $0x48] sm:$0xff]
  %v1034 = vld [vmem:[%s6 + $0x50] sm:$0xff]
  %v1035 = vld [vmem:[%s6 + $0x58] sm:$0xff]
  %v1036 = vld [vmem:[%s6 + $0x60] sm:$0xff]
  %v1037 = vld [vmem:[%s6 + $0x68] sm:$0xff]
  %v1038 = vld [vmem:[%s6 + $0x70] sm:$0xff]
  %v1039 = vld [vmem:[%s6 + $0x78] sm:$0xff]
  %v1040 = vld [vmem:[%s7] sm:$0x1]
  %v1042 = vlaneseq
  %v1043 = vshrl.u32 %v1042, 7
  %v1044 = vsub.s32 0, %v1043
  %v1045 = vrot.slane %v1040, %v1044
  %1047 = vmatprep.subr.mxu0 0.0
  %1048 = vmatpush1.msra.mxu0 %v1024
  %1049 = vmatprep.subr.mxu0 0.0
  %1050 = vmatpush1.msra.mxu0 %v1025
  %1051 = vmatprep.subr.mxu0 0.0
  %1052 = vmatpush1.msra.mxu0 %v1026
  %1053 = vmatprep.subr.mxu0 0.0
  %1054 = vmatpush1.msra.mxu0 %v1027
  %1055 = vmatprep.subr.mxu0 0.0
  %1056 = vmatpush1.msra.mxu0 %v1028
  %1057 = vmatprep.subr.mxu0 0.0
  %1058 = vmatpush1.msra.mxu0 %v1029
  %1059 = vmatprep.subr.mxu0 0.0
  %1060 = vmatpush1.msra.mxu0 %v1030
  %1061 = vmatprep.subr.mxu0 0.0
  %1062 = vmatpush1.msra.mxu0 %v1031
  %1063 = vmatprep.subr.mxu0 0.0
  %1064 = vmatpush1.msra.mxu0 %v1032
  %1065 = vmatprep.subr.mxu0 0.0
  %1066 = vmatpush1.msra.mxu0 %v1033
  %1067 = vmatprep.subr.mxu0 0.0
  %1068 = vmatpush1.msra.mxu0 %v1034
  %1069 = vmatprep.subr.mxu0 0.0
  %1070 = vmatpush1.msra.mxu0 %v1035
  %1071 = vmatprep.subr.mxu0 0.0
  %1072 = vmatpush1.msra.mxu0 %v1036
  %1073 = vmatprep.subr.mxu0 0.0
  %1074 = vmatpush1.msra.mxu0 %v1037
  %1075 = vmatprep.subr.mxu0 0.0
  %1076 = vmatpush1.msra.mxu0 %v1038
  %1077 = vmatprep.subr.mxu0 0.0
  %1078 = vmatpush1.msra.mxu0 %v1039
  %1079 = vmatprep.subr.mxu0 0.0
  %1080 = vmatpush1.msra.mxu0 0.0
  %1081 = vmatprep.subr.mxu0 0.0
  %1082 = vmatpush1.msra.mxu0 0.0
  %1083 = vmatprep.subr.mxu0 0.0
  %1084 = vmatpush1.msra.mxu0 0.0
  %1085 = vmatprep.subr.mxu0 0.0
  %1086 = vmatpush1.msra.mxu0 0.0
  %1087 = vmatprep.subr.mxu0 0.0
  %1088 = vmatpush1.msra.mxu0 0.0
  %1089 = vmatprep.subr.mxu0 0.0
  %1090 = vmatpush1.msra.mxu0 0.0
  %1091 = vmatprep.subr.mxu0 0.0
  %1092 = vmatpush1.msra.mxu0 0.0
  %1093 = vmatprep.subr.mxu0 0.0
  %1094 = vmatpush1.msra.mxu0 0.0
  %1095 = vmatprep.subr.mxu0 0.0
  %1096 = vmatpush1.msra.mxu0 0.0
  %1097 = vmatprep.subr.mxu0 0.0
  %1098 = vmatpush1.msra.mxu0 0.0
  %1099 = vmatprep.subr.mxu0 0.0
  %1100 = vmatpush1.msra.mxu0 0.0
  %1101 = vmatprep.subr.mxu0 0.0
  %1102 = vmatpush1.msra.mxu0 0.0
  %1103 = vmatprep.subr.mxu0 0.0
  %1104 = vmatpush1.msra.mxu0 0.0
  %1105 = vmatprep.subr.mxu0 0.0
  %1106 = vmatpush1.msra.mxu0 0.0
  %1107 = vmatprep.subr.mxu0 0.0
  %1108 = vmatpush1.msra.mxu0 0.0
  %1109 = vmatprep.subr.mxu0 0.0
  %1110 = vmatpush1.msra.mxu0 0.0
  %1111 = vmatprep.mubr.f32.mxu0 0.0
  %1112 = vmatmul.mubr.f32.gmra.mrb[0].mxu0 %v1023
  %v1113 = vpop.f32.mrb[0].mxu0
  %v1114 = vadd.f32 %v1045, %v1113
  %v1115 = vpop.f32.mrb[0].mxu0
  %1116 = vdwg.mxu0
  %v1117 = vmax.f32 %v1114, 0.0
  %v1118 = vld [vmem:[%s8] sm:$0xff]
  %v1119 = vld [vmem:[%s8 + $0x8] sm:$0xff]
  %v1120 = vld [vmem:[%s8 + $0x10] sm:$0xff]
  %v1121 = vld [vmem:[%s8 + $0x18] sm:$0xff]
  %v1122 = vld [vmem:[%s8 + $0x20] sm:$0xff]
  %v1123 = vld [vmem:[%s8 + $0x28] sm:$0xff]
  %v1124 = vld [vmem:[%s8 + $0x30] sm:$0xff]
  %v1125 = vld [vmem:[%s8 + $0x38] sm:$0xff]
  %v1126 = vld [vmem:[%s1] sm:$0xff]
  %v1127 = vld [vmem:[%s9] sm:$0xff]
  %vm1128 = vcmask 64512
  %v1130 = vsel %vm1128, %v1126, 0
  %1132 = vmatprep.subr.mxu0 0.0
  %1133 = vmatpush1.msra.mxu0 %v1127
  %1134 = vmatprep.subr.mxu0 0.0
  %1135 = vmatpush1.msra.mxu0 0.0
  %1136 = vmatprep.subr.mxu0 0.0
  %1137 = vmatpush1.msra.mxu0 0.0
  %1138 = vmatprep.subr.mxu0 0.0
  %1139 = vmatpush1.msra.mxu0 0.0
  %1140 = vmatprep.subr.mxu0 0.0
  %1141 = vmatpush1.msra.mxu0 0.0
  %1142 = vmatprep.subr.mxu0 0.0
  %1143 = vmatpush1.msra.mxu0 0.0
  %1144 = vmatprep.subr.mxu0 0.0
  %1145 = vmatpush1.msra.mxu0 0.0
  %1146 = vmatprep.subr.mxu0 0.0
  %1147 = vmatpush1.msra.mxu0 0.0
  %1148 = vmatprep.subr.mxu0 0.0
  %1149 = vmatpush1.msra.mxu0 0.0
  %1150 = vmatprep.subr.mxu0 0.0
  %1151 = vmatpush1.msra.mxu0 0.0
  %1152 = vmatprep.subr.mxu0 0.0
  %1153 = vmatpush1.msra.mxu0 0.0
  %1154 = vmatprep.subr.mxu0 0.0
  %1155 = vmatpush1.msra.mxu0 0.0
  %1156 = vmatprep.subr.mxu0 0.0
  %1157 = vmatpush1.msra.mxu0 0.0
  %1158 = vmatprep.subr.mxu0 0.0
  %1159 = vmatpush1.msra.mxu0 0.0
  %1160 = vmatprep.subr.mxu0 0.0
  %1161 = vmatpush1.msra.mxu0 0.0
  %1162 = vmatprep.subr.mxu0 0.0
  %1163 = vmatpush1.msra.mxu0 0.0
  %1164 = vmatprep.subr.mxu0 0.0
  %1165 = vmatpush1.msra.mxu0 0.0
  %1166 = vmatprep.subr.mxu0 0.0
  %1167 = vmatpush1.msra.mxu0 0.0
  %1168 = vmatprep.subr.mxu0 0.0
  %1169 = vmatpush1.msra.mxu0 0.0
  %1170 = vmatprep.subr.mxu0 0.0
  %1171 = vmatpush1.msra.mxu0 0.0
  %1172 = vmatprep.subr.mxu0 0.0
  %1173 = vmatpush1.msra.mxu0 0.0
  %1174 = vmatprep.subr.mxu0 0.0
  %1175 = vmatpush1.msra.mxu0 0.0
  %1176 = vmatprep.subr.mxu0 0.0
  %1177 = vmatpush1.msra.mxu0 0.0
  %1178 = vmatprep.subr.mxu0 0.0
  %1179 = vmatpush1.msra.mxu0 0.0
  %1180 = vmatprep.subr.mxu0 0.0
  %1181 = vmatpush1.msra.mxu0 0.0
  %1182 = vmatprep.subr.mxu0 0.0
  %1183 = vmatpush1.msra.mxu0 0.0
  %1184 = vmatprep.subr.mxu0 0.0
  %1185 = vmatpush1.msra.mxu0 0.0
  %1186 = vmatprep.subr.mxu0 0.0
  %1187 = vmatpush1.msra.mxu0 0.0
  %1188 = vmatprep.subr.mxu0 0.0
  %1189 = vmatpush1.msra.mxu0 0.0
  %1190 = vmatprep.subr.mxu0 0.0
  %1191 = vmatpush1.msra.mxu0 0.0
  %1192 = vmatprep.subr.mxu0 0.0
  %1193 = vmatpush1.msra.mxu0 0.0
  %1194 = vmatprep.subr.mxu0 0.0
  %1195 = vmatpush1.msra.mxu0 0.0
  %1196 = vmatprep.mubr.f32.mxu0 0.0
  %1197 = vmatmul.mubr.f32.gmra.mrb[0].mxu0 %v1130
  %v1198 = vpop.f32.mrb[0].mxu0
  %v1199 = vadd.f32 0.0, %v1198
  %v1200 = vpop.f32.mrb[0].mxu0
  %1201 = vdwg.mxu0
  %v1203 = vsel %vm60, %v1117, 0
  %1205 = vmatprep.subr.mxu0 0.0
  %1206 = vmatpush1.msra.mxu0 %v1118
  %1207 = vmatprep.subr.mxu0 0.0
  %1208 = vmatpush1.msra.mxu0 %v1119
  %1209 = vmatprep.subr.mxu0 0.0
  %1210 = vmatpush1.msra.mxu0 %v1120
  %1211 = vmatprep.subr.mxu0 0.0
  %1212 = vmatpush1.msra.mxu0 %v1121
  %1213 = vmatprep.subr.mxu0 0.0
  %1214 = vmatpush1.msra.mxu0 %v1122
  %1215 = vmatprep.subr.mxu0 0.0
  %1216 = vmatpush1.msra.mxu0 %v1123
  %1217 = vmatprep.subr.mxu0 0.0
  %1218 = vmatpush1.msra.mxu0 %v1124
  %1219 = vmatprep.subr.mxu0 0.0
  %1220 = vmatpush1.msra.mxu0 %v1125
  %1221 = vmatprep.subr.mxu0 0.0
  %1222 = vmatpush1.msra.mxu0 0.0
  %1223 = vmatprep.subr.mxu0 0.0
  %1224 = vmatpush1.msra.mxu0 0.0
  %1225 = vmatprep.subr.mxu0 0.0
  %1226 = vmatpush1.msra.mxu0 0.0
  %1227 = vmatprep.subr.mxu0 0.0
  %1228 = vmatpush1.msra.mxu0 0.0
  %1229 = vmatprep.subr.mxu0 0.0
  %1230 = vmatpush1.msra.mxu0 0.0
  %1231 = vmatprep.subr.mxu0 0.0
  %1232 = vmatpush1.msra.mxu0 0.0
  %1233 = vmatprep.subr.mxu0 0.0
  %1234 = vmatpush1.msra.mxu0 0.0
  %1235 = vmatprep.subr.mxu0 0.0
  %1236 = vmatpush1.msra.mxu0 0.0
  %1237 = vmatprep.subr.mxu0 0.0
  %1238 = vmatpush1.msra.mxu0 0.0
  %1239 = vmatprep.subr.mxu0 0.0
  %1240 = vmatpush1.msra.mxu0 0.0
  %1241 = vmatprep.subr.mxu0 0.0
  %1242 = vmatpush1.msra.mxu0 0.0
  %1243 = vmatprep.subr.mxu0 0.0
  %1244 = vmatpush1.msra.mxu0 0.0
  %1245 = vmatprep.subr.mxu0 0.0
  %1246 = vmatpush1.msra.mxu0 0.0
  %1247 = vmatprep.subr.mxu0 0.0
  %1248 = vmatpush1.msra.mxu0 0.0
  %1249 = vmatprep.subr.mxu0 0.0
  %1250 = vmatpush1.msra.mxu0 0.0
  %1251 = vmatprep.subr.mxu0 0.0
  %1252 = vmatpush1.msra.mxu0 0.0
  %1253 = vmatprep.subr.mxu0 0.0
  %1254 = vmatpush1.msra.mxu0 0.0
  %1255 = vmatprep.subr.mxu0 0.0
  %1256 = vmatpush1.msra.mxu0 0.0
  %1257 = vmatprep.subr.mxu0 0.0
  %1258 = vmatpush1.msra.mxu0 0.0
  %1259 = vmatprep.subr.mxu0 0.0
  %1260 = vmatpush1.msra.mxu0 0.0
  %1261 = vmatprep.subr.mxu0 0.0
  %1262 = vmatpush1.msra.mxu0 0.0
  %1263 = vmatprep.subr.mxu0 0.0
  %1264 = vmatpush1.msra.mxu0 0.0
  %1265 = vmatprep.subr.mxu0 0.0
  %1266 = vmatpush1.msra.mxu0 0.0
  %1267 = vmatprep.subr.mxu0 0.0
  %1268 = vmatpush1.msra.mxu0 0.0
  %1269 = vmatprep.mubr.f32.mxu0 0.0
  %1270 = vmatmul.mubr.f32.gmra.mrb[0].mxu0 %v1203
  %v1271 = vpop.f32.mrb[0].mxu0
  %v1272 = vadd.f32 %v1199, %v1271
  %v1273 = vpop.f32.mrb[0].mxu0
  %1274 = vdwg.mxu0
  %v1275 = vld [vmem:[%s10] sm:$0x1]
  %v1277 = vlaneseq
  %v1278 = vshrl.u32 %v1277, 7
  %v1279 = vsub.s32 0, %v1278
  %v1280 = vrot.slane %v1275, %v1279
  %v1282 = vadd.f32 %v1272, %v1280
  %v1283 = vtanh.pop %v1282
  %v1284 = vld [vmem:[%s11] sm:$0xff]
  %v1285 = vld [vmem:[%s11 + $0x8] sm:$0xff]
  %v1286 = vld [vmem:[%s11 + $0x10] sm:$0xff]
  %v1287 = vld [vmem:[%s11 + $0x18] sm:$0xff]
  %v1288 = vld [vmem:[%s11 + $0x20] sm:$0xff]
  %v1289 = vld [vmem:[%s11 + $0x28] sm:$0xff]
  %v1290 = vld [vmem:[%s11 + $0x30] sm:$0xff]
  %v1291 = vld [vmem:[%s11 + $0x38] sm:$0xff]
  %v1292 = vld [vmem:[%s11 + $0x40] sm:$0xff]
  %v1293 = vld [vmem:[%s11 + $0x48] sm:$0xff]
  %v1294 = vld [vmem:[%s11 + $0x50] sm:$0xff]
  %v1295 = vld [vmem:[%s11 + $0x58] sm:$0xff]
  %v1296 = vld [vmem:[%s11 + $0x60] sm:$0xff]
  %v1297 = vld [vmem:[%s11 + $0x68] sm:$0xff]
  %v1298 = vld [vmem:[%s11 + $0x70] sm:$0xff]
  %v1299 = vld [vmem:[%s11 + $0x78] sm:$0xff]
  %v1300 = vld [vmem:[%s12] sm:$0x1]
  %v1302 = vlaneseq
  %v1303 = vshrl.u32 %v1302, 7
  %v1304 = vsub.s32 0, %v1303
  %v1305 = vrot.slane %v1300, %v1304
  %1307 = vmatprep.subr.mxu0 0.0
  %1308 = vmatpush1.msra.mxu0 %v1284
  %1309 = vmatprep.subr.mxu0 0.0
  %1310 = vmatpush1.msra.mxu0 %v1285
  %1311 = vmatprep.subr.mxu0 0.0
  %1312 = vmatpush1.msra.mxu0 %v1286
  %1313 = vmatprep.subr.mxu0 0.0
  %1314 = vmatpush1.msra.mxu0 %v1287
  %1315 = vmatprep.subr.mxu0 0.0
  %1316 = vmatpush1.msra.mxu0 %v1288
  %1317 = vmatprep.subr.mxu0 0.0
  %1318 = vmatpush1.msra.mxu0 %v1289
  %1319 = vmatprep.subr.mxu0 0.0
  %1320 = vmatpush1.msra.mxu0 %v1290
  %1321 = vmatprep.subr.mxu0 0.0
  %1322 = vmatpush1.msra.mxu0 %v1291
  %1323 = vmatprep.subr.mxu0 0.0
  %1324 = vmatpush1.msra.mxu0 %v1292
  %1325 = vmatprep.subr.mxu0 0.0
  %1326 = vmatpush1.msra.mxu0 %v1293
  %1327 = vmatprep.subr.mxu0 0.0
  %1328 = vmatpush1.msra.mxu0 %v1294
  %1329 = vmatprep.subr.mxu0 0.0
  %1330 = vmatpush1.msra.mxu0 %v1295
  %1331 = vmatprep.subr.mxu0 0.0
  %1332 = vmatpush1.msra.mxu0 %v1296
  %1333 = vmatprep.subr.mxu0 0.0
  %1334 = vmatpush1.msra.mxu0 %v1297
  %1335 = vmatprep.subr.mxu0 0.0
  %1336 = vmatpush1.msra.mxu0 %v1298
  %1337 = vmatprep.subr.mxu0 0.0
  %1338 = vmatpush1.msra.mxu0 %v1299
  %1339 = vmatprep.subr.mxu0 0.0
  %1340 = vmatpush1.msra.mxu0 0.0
  %1341 = vmatprep.subr.mxu0 0.0
  %1342 = vmatpush1.msra.mxu0 0.0
  %1343 = vmatprep.subr.mxu0 0.0
  %1344 = vmatpush1.msra.mxu0 0.0
  %1345 = vmatprep.subr.mxu0 0.0
  %1346 = vmatpush1.msra.mxu0 0.0
  %1347 = vmatprep.subr.mxu0 0.0
  %1348 = vmatpush1.msra.mxu0 0.0
  %1349 = vmatprep.subr.mxu0 0.0
  %1350 = vmatpush1.msra.mxu0 0.0
  %1351 = vmatprep.subr.mxu0 0.0
  %1352 = vmatpush1.msra.mxu0 0.0
  %1353 = vmatprep.subr.mxu0 0.0
  %1354 = vmatpush1.msra.mxu0 0.0
  %1355 = vmatprep.subr.mxu0 0.0
  %1356 = vmatpush1.msra.mxu0 0.0
  %1357 = vmatprep.subr.mxu0 0.0
  %1358 = vmatpush1.msra.mxu0 0.0
  %1359 = vmatprep.subr.mxu0 0.0
  %1360 = vmatpush1.msra.mxu0 0.0
  %1361 = vmatprep.subr.mxu0 0.0
  %1362 = vmatpush1.msra.mxu0 0.0
  %1363 = vmatprep.subr.mxu0 0.0
  %1364 = vmatpush1.msra.mxu0 0.0
  %1365 = vmatprep.subr.mxu0 0.0
  %1366 = vmatpush1.msra.mxu0 0.0
  %1367 = vmatprep.subr.mxu0 0.0
  %1368 = vmatpush1.msra.mxu0 0.0
  %1369 = vmatprep.subr.mxu0 0.0
  %1370 = vmatpush1.msra.mxu0 0.0
  %1371 = vmatprep.mubr.f32.mxu0 0.0
  %1372 = vmatmul.mubr.f32.gmra.mrb[0].mxu0 %v1283
  %v1373 = vpop.f32.mrb[0].mxu0
  %v1374 = vadd.f32 %v1305, %v1373
  %v1375 = vpop.f32.mrb[0].mxu0
  %1376 = vdwg.mxu0
  %v1377 = vlaneseq
  %v1378 = vand.u32 %v1377, 127
  %vm1379 = vcmp.lt.s32.totalorder %v1378, 7
  %v1380 = vsel %vm1379, %v1374, -inf
  %1381 = vmax.xlane.f32.xlu0 %v1380
  %v1382 = vpop.xlane.xlu0 %1381
  %v1383 = vsub.f32 %v1374, %v1382
  %v1384 = vmul.f32 %v1383, 1.442695
  %v1385 = vpow.pop %v1384
  %v1386 = vsel %vm1379, %v1385, 0.0
  %1387 = vadd.xlane.f32.xlu0 %v1386
  %v1388 = vpop.xlane.xlu0 %1387
  %v1389 = vlog2.pop %v1388
  %v1390 = vmul.f32 %v1389, 0.6931472
  %v1391 = vadd.f32 %v1390, %v1382
  %v1392 = vsel %vm1379, %v1391, 0.0
  %v1393 = vsub.f32 %v1374, %v1392
  %1394 = vst [vmem:[%s13] sm:$0xff] %v1393
  // Predicated region
  $region54: #{actor_critic_forward.1} parent=0 // pred_check
    _
  $region55: #{actor_critic_forward.1} parent=0 // pred_check_branch
    %1396 = sbr.rel (0) target = $region57
  $region56: #{actor_critic_forward.1} parent=0 // pred_region
    _
  $region57: #{actor_critic_forward.1} parent=0 // pred_fallthru
    _
  // Predicated region
  $region58: #{actor_critic_forward.1} parent=0 // pred_check
    _
  $region59: #{actor_critic_forward.1} parent=0 // pred_check_branch
    %1398 = sbr.rel (0) target = $region61
  $region60: #{actor_critic_forward.1} parent=0 // pred_region
    _
  $region61: #{actor_critic_forward.1} parent=0 // pred_fallthru
    _

</llo_original>
